<compile_context>
chip_gen: v6e
topology: v6e:2x2x1
jax: 0.10.0
libtpu: 0.0.40
codegen_flags: <defaults>
</compile_context>

<pallas_src>
import functools
import math

import jax
import jax.numpy as jnp
from jax.experimental import pallas as pl
from jax.experimental.pallas import tpu as pltpu


# ----------------------------------------------------------------------------
# Kernel 1: per-head fused QKV projection.
# ----------------------------------------------------------------------------
def qkv_proj_kernel(x_ref, w_ref, q_ref, k_ref, v_ref, *, d, inv_sqrt_d):
    # x_ref: [1, ts, H] (bf16)   w_ref: [1, H, 3d] (bf16, [Wq|Wk|Wv] of head h)
    # q/k/v_ref: [1, 1, ts, d] (bf16)
    x = x_ref[0]                                                   # [ts, H]
    qkv = jnp.dot(x, w_ref[0], preferred_element_type=jnp.float32)  # [ts, 3d] f32
    q = qkv[:, :d] * inv_sqrt_d          # fold 1/sqrt(d) into q (off hot path)
    k = qkv[:, d:2 * d]
    v = qkv[:, 2 * d:]
    q_ref[0, 0] = q.astype(q_ref.dtype)
    k_ref[0, 0] = k.astype(k_ref.dtype)
    v_ref[0, 0] = v.astype(v_ref.dtype)


# ----------------------------------------------------------------------------
# Kernel 2: flash attention (online softmax over KV tiles) + accumulated
# output projection over head slabs.
# ----------------------------------------------------------------------------
def flash_attn_oproj_kernel(q_ref, k_ref, v_ref, wo_ref, o_ref,
                            m_scr, l_scr, acc_scr, oacc_scr, *, scaled_softmax):
    # grid = (B, nq, nh, nk); output block depends only on (b, qi)
    h = pl.program_id(2)
    ki = pl.program_id(3)
    nh = pl.num_programs(2)
    nk = pl.num_programs(3)

    @pl.when(ki == 0)
    def _init_head():
        m_scr[...] = jnp.full(m_scr.shape, -jnp.inf, m_scr.dtype)
        l_scr[...] = jnp.zeros(l_scr.shape, l_scr.dtype)
        acc_scr[...] = jnp.zeros(acc_scr.shape, acc_scr.dtype)

    @pl.when((ki == 0) & (h == 0))
    def _init_out():
        oacc_scr[...] = jnp.zeros(oacc_scr.shape, oacc_scr.dtype)

    q = q_ref[0, 0]                           # [tq, d] bf16, pre-scaled 1/sqrt(d)
    k = k_ref[0, 0]                           # [tk, d] bf16
    v = v_ref[0, 0]                           # [tk, d] bf16

    # scores for this (q-tile, kv-tile): bf16 operands, f32 accumulation.
    s = jax.lax.dot_general(q, k, (((1,), (1,)), ((), ())),
                            preferred_element_type=jnp.float32)     # [tq, tk] f32

    m_prev = m_scr[...]
    m_new = jnp.maximum(m_prev, jnp.max(s, axis=-1, keepdims=True))
    alpha = jnp.exp(m_prev - m_new)                                 # [tq, 1]
    p = jnp.exp(s - m_new)                                          # [tq, tk] f32
    l_scr[...] = alpha * l_scr[...] + jnp.sum(p, axis=-1, keepdims=True)
    acc_scr[...] = alpha * acc_scr[...] + jnp.dot(
        p.astype(v.dtype), v, preferred_element_type=jnp.float32)   # bf16 MXU
    m_scr[...] = m_new

    @pl.when(ki == nk - 1)
    def _finish_head():
        # Deferred normalization; scaled_softmax folded into the [tq,1] factor.
        inv = pl.reciprocal(l_scr[...], approx=True) * scaled_softmax
        head_out = (acc_scr[...] * inv).astype(wo_ref.dtype)        # [tq, d] bf16
        # Output projection accumulated per head slab: out += head_out @ Wo[h]
        oacc_scr[...] += jnp.dot(head_out, wo_ref[0],
                                 preferred_element_type=jnp.float32)  # [tq, H]

    @pl.when((ki == nk - 1) & (h == nh - 1))
    def _store():
        o_ref[0] = oacc_scr[...].astype(o_ref.dtype)


# ----------------------------------------------------------------------------
# Wrapper.
# ----------------------------------------------------------------------------
def _pick_tile(n, cap):
    """Largest tile <= cap that divides n (multiple of 8), else full n."""
    if n <= cap:
        return n
    if n % 8 != 0:
        return n
    t = cap - (cap % 8)
    while t > 8 and n % t != 0:
        t -= 8
    return t if n % t == 0 else n


def _vmem_limit_bytes():
    """~80% of the chip's physical VMEM (~51 MiB v7x, ~102 MiB v5e/v6e)."""
    cap = 64 * 1024 * 1024
    try:
        info = pltpu.get_tpu_info()
        cap = int(getattr(info, "vmem_capacity_bytes", cap))
    except Exception:
        pass
    return int(cap * 0.80)


@functools.partial(jax.jit, static_argnums=(3, 4))
def multi_head_attention(hidden_states, qkv_weights, o_weights, num_heads,
                         scaled_softmax):
    B, S, H = hidden_states.shape
    assert H % num_heads == 0
    d = H // num_heads
    assert qkv_weights.shape == (H, 3 * H)
    assert o_weights.shape == (H, H)

    # One-time weight layout plumbing (outside the kernels): build fused
    # per-head [H, 3d] = [Wq|Wk|Wv] slabs (one wide dot per grid step) and
    # pre-cast everything on the MXU path to bf16.
    w = qkv_weights.reshape(H, 3, num_heads, d)
    w_fused = jnp.transpose(w, (2, 0, 1, 3)).reshape(num_heads, H, 3 * d)
    w_fused = w_fused.astype(jnp.bfloat16)                    # [nh, H, 3d]
    wo_heads = o_weights.reshape(num_heads, d, H).astype(jnp.bfloat16)
    x_bf16 = hidden_states.astype(jnp.bfloat16)

    ts = _pick_tile(S, 1024)    # projection seq tile (big: kill weight restream)
    tq = _pick_tile(S, 512)     # attention q tile (big: amortize step overhead)
    tk = _pick_tile(S, 512)     # attention kv tile
    ns, nq, nk = S // ts, S // tq, S // tk

    vmem_limit = _vmem_limit_bytes()

    # --- kernel 1: per-head fused QKV projection ---------------------------
    # Grid (h, b, si): the [H,3d] weight slab block index only changes on the
    # outermost axis, so it is DMA'd once per head instead of once per
    # activation tile (the weight restream was the kernel-1 bottleneck).
    q, k, v = pl.pallas_call(
        functools.partial(qkv_proj_kernel, d=d, inv_sqrt_d=1.0 / math.sqrt(d)),
        out_shape=(
            jax.ShapeDtypeStruct((B, num_heads, S, d), jnp.bfloat16),
            jax.ShapeDtypeStruct((B, num_heads, S, d), jnp.bfloat16),
            jax.ShapeDtypeStruct((B, num_heads, S, d), jnp.bfloat16),
        ),
        grid=(num_heads, B, ns),
        in_specs=[
            pl.BlockSpec((1, ts, H), lambda h, b, si: (b, si, 0)),
            pl.BlockSpec((1, H, 3 * d), lambda h, b, si: (h, 0, 0)),
        ],
        out_specs=(
            pl.BlockSpec((1, 1, ts, d), lambda h, b, si: (b, h, si, 0)),
            pl.BlockSpec((1, 1, ts, d), lambda h, b, si: (b, h, si, 0)),
            pl.BlockSpec((1, 1, ts, d), lambda h, b, si: (b, h, si, 0)),
        ),
        compiler_params=pltpu.CompilerParams(
            dimension_semantics=("parallel", "parallel", "parallel"),
            vmem_limit_bytes=vmem_limit),
    )(x_bf16, w_fused)

    # --- kernel 2: flash attention + accumulated output projection ---------
    # TODO(synk): for d < 128 a lane-dense packing (2+ heads per q/k/v block)
    # would avoid masked vld/vst and underfilled MXU contractions; kept as
    # [B, nh, S, d] here so the last block dim always equals the full dim.
    # TODO(synk): on v7x with tiny B*nq, split the head range across the two
    # TensorCores and add the partial oproj outputs in an epilogue (the head
    # axis cannot be marked "parallel" as-is because oacc accumulates over it).
    out = pl.pallas_call(
        functools.partial(flash_attn_oproj_kernel,
                          scaled_softmax=float(scaled_softmax)),
        out_shape=jax.ShapeDtypeStruct((B, S, H), hidden_states.dtype),
        grid=(B, nq, num_heads, nk),
        in_specs=[
            pl.BlockSpec((1, 1, tq, d), lambda b, qi, h, ki: (b, h, qi, 0)),
            pl.BlockSpec((1, 1, tk, d), lambda b, qi, h, ki: (b, h, ki, 0)),
            pl.BlockSpec((1, 1, tk, d), lambda b, qi, h, ki: (b, h, ki, 0)),
            pl.BlockSpec((1, d, H), lambda b, qi, h, ki: (h, 0, 0)),
        ],
        out_specs=pl.BlockSpec((1, tq, H), lambda b, qi, h, ki: (b, qi, 0)),
        scratch_shapes=[
            pltpu.VMEM((tq, 1), jnp.float32),    # m   (running max)
            pltpu.VMEM((tq, 1), jnp.float32),    # l   (running denom)
            pltpu.VMEM((tq, d), jnp.float32),    # acc (running p@v)
            pltpu.VMEM((tq, H), jnp.float32),    # output-projection accumulator
        ],
        compiler_params=pltpu.CompilerParams(
            dimension_semantics=("parallel", "parallel", "arbitrary",
                                 "arbitrary"),
            vmem_limit_bytes=vmem_limit),
    )(q, k, v, wo_heads)

    return out


# ----------------------------------------------------------------------------
# Pure-JAX reference (matches the PyTorch module semantics; f32 math).
# ----------------------------------------------------------------------------
def _reference(hidden_states, qkv_weights, o_weights, num_heads, scaled_softmax):
    B, S, H = hidden_states.shape
    d = H // num_heads
    qkv = jnp.einsum("bsh,hk->bsk", hidden_states, qkv_weights)
    qkv = qkv.reshape(B, S, 3, num_heads, d)
    q, k, v = qkv[:, :, 0], qkv[:, :, 1], qkv[:, :, 2]           # [B, S, nh, d]
    q = q.transpose(0, 2, 1, 3)                                  # [B, nh, S, d]
    k = k.transpose(0, 2, 1, 3)
    v = v.transpose(0, 2, 1, 3)
    s = jnp.einsum("bhqd,bhkd->bhqk", q, k) / jnp.sqrt(jnp.float32(d))
    p = jax.nn.softmax(s, axis=-1)
    a = scaled_softmax * jnp.einsum("bhqk,bhkd->bhqd", p, v)     # [B, nh, S, d]
    a = a.transpose(0, 2, 1, 3).reshape(B, S, H)
    return jnp.einsum("bsh,ho->bso", a, o_weights)


if __name__ == "__main__":
    B, S, H = 2, 8, 32
    num_heads = 4
    scaled_softmax = 2.0

    key = jax.random.PRNGKey(0)
    k1, k2, k3 = jax.random.split(key, 3)
    hidden_states = jax.random.normal(k1, (B, S, H), dtype=jnp.float32)
    qkv_weights = jax.random.normal(k2, (H, 3 * H), dtype=jnp.float32) * 0.1
    o_weights = jax.random.normal(k3, (H, H), dtype=jnp.float32) * 0.1

    out = multi_head_attention(hidden_states, qkv_weights, o_weights,
                               num_heads, scaled_softmax)
    out = jax.block_until_ready(out)

    # Reference sees the same bf16 rounding of inputs/weights as the kernel
    # (the kernel keeps all accumulations and softmax stats in f32); tolerance
    # covers bf16 q/k/v/p/head_out rounding + the EUP approx reciprocal.
    ref = _reference(
        hidden_states.astype(jnp.bfloat16).astype(jnp.float32),
        qkv_weights.astype(jnp.bfloat16).astype(jnp.float32),
        o_weights.astype(jnp.bfloat16).astype(jnp.float32),
        num_heads, scaled_softmax)
    assert out.shape == (B, S, H)
    assert jnp.allclose(out, ref, atol=3e-2, rtol=3e-2), float(
        jnp.max(jnp.abs(out - ref)))

    print("KERNEL_OK")
</pallas_src>

<mosaic_0001>
module attributes {stable_mosaic.version = 11 : i64} {
  func.func @qkv_proj_kernel(%arg0: i32, %arg1: i32, %arg2: i32, %arg3: memref<1x8x32xbf16, #tpu.memory_space<vmem>>, %arg4: memref<1x32x24xbf16, #tpu.memory_space<vmem>>, %arg5: memref<1x1x8x8xbf16, #tpu.memory_space<vmem>>, %arg6: memref<1x1x8x8xbf16, #tpu.memory_space<vmem>>, %arg7: memref<1x1x8x8xbf16, #tpu.memory_space<vmem>>) attributes {dimension_semantics = [#tpu.dimension_semantics<parallel>, #tpu.dimension_semantics<parallel>, #tpu.dimension_semantics<parallel>], iteration_bounds = array<i64: 4, 2, 1>, scalar_prefetch = 0 : i64, scratch_operands = 0 : i64, tpu.core_type = #tpu.core_type<tc>, window_params = [{transform_indices = @transform_0, window_bounds = array<i64: 1, 8, 32>}, {transform_indices = @transform_1, window_bounds = array<i64: 1, 32, 24>}, {transform_indices = @transform_2, window_bounds = array<i64: 1, 1, 8, 8>}, {transform_indices = @transform_3, window_bounds = array<i64: 1, 1, 8, 8>}, {transform_indices = @transform_4, window_bounds = array<i64: 1, 1, 8, 8>}]} {
    %c0 = arith.constant 0 : index
    %c0_0 = arith.constant 0 : index
    %c0_1 = arith.constant 0 : index
    %0 = vector.load %arg3[%c0, %c0_0, %c0_1] : memref<1x8x32xbf16, #tpu.memory_space<vmem>>, vector<1x8x32xbf16>
    %1 = vector.shape_cast %0 : vector<1x8x32xbf16> to vector<8x32xbf16>
    %c0_2 = arith.constant 0 : index
    %c0_3 = arith.constant 0 : index
    %c0_4 = arith.constant 0 : index
    %2 = vector.load %arg4[%c0_2, %c0_3, %c0_4] : memref<1x32x24xbf16, #tpu.memory_space<vmem>>, vector<1x32x24xbf16>
    %3 = vector.shape_cast %2 : vector<1x32x24xbf16> to vector<32x24xbf16>
    %cst = arith.constant dense<0.000000e+00> : vector<8x24xf32>
    %4 = tpu.matmul %1, %3, %cst {dimension_numbers = #tpu.dot_dimension_numbers<[1], [0], [0], [1], [0, 0, 1, 1], [], []>} : vector<8x32xbf16>, vector<32x24xbf16>, vector<8x24xf32> -> vector<8x24xf32>
    %5 = vector.extract_strided_slice %4 {offsets = [0, 0], sizes = [8, 8], strides = [1, 1]} : vector<8x24xf32> to vector<8x8xf32>
    %cst_5 = arith.constant 0.353553385 : f32
    %6 = vector.broadcast %cst_5 : f32 to vector<8x8xf32>
    %7 = arith.mulf %5, %6 : vector<8x8xf32>
    %8 = vector.extract_strided_slice %4 {offsets = [0, 8], sizes = [8, 8], strides = [1, 1]} : vector<8x24xf32> to vector<8x8xf32>
    %9 = vector.extract_strided_slice %4 {offsets = [0, 16], sizes = [8, 8], strides = [1, 1]} : vector<8x24xf32> to vector<8x8xf32>
    %10 = arith.truncf %7 : vector<8x8xf32> to vector<8x8xbf16>
    %c0_6 = arith.constant 0 : index
    %c0_7 = arith.constant 0 : index
    %c0_8 = arith.constant 0 : index
    %c0_9 = arith.constant 0 : index
    %11 = vector.load %arg5[%c0_6, %c0_7, %c0_8, %c0_9] : memref<1x1x8x8xbf16, #tpu.memory_space<vmem>>, vector<1x1x8x8xbf16>
    %12 = vector.shape_cast %11 : vector<1x1x8x8xbf16> to vector<8x8xbf16>
    %13 = vector.shape_cast %10 : vector<8x8xbf16> to vector<1x1x8x8xbf16>
    tpu.vector_store %arg5[%c0_6, %c0_7, %c0_8, %c0_9], %13 {strides = array<i32>} : memref<1x1x8x8xbf16, #tpu.memory_space<vmem>>, vector<1x1x8x8xbf16>,
    %14 = arith.truncf %8 : vector<8x8xf32> to vector<8x8xbf16>
    %c0_10 = arith.constant 0 : index
    %c0_11 = arith.constant 0 : index
    %c0_12 = arith.constant 0 : index
    %c0_13 = arith.constant 0 : index
    %15 = vector.load %arg6[%c0_10, %c0_11, %c0_12, %c0_13] : memref<1x1x8x8xbf16, #tpu.memory_space<vmem>>, vector<1x1x8x8xbf16>
    %16 = vector.shape_cast %15 : vector<1x1x8x8xbf16> to vector<8x8xbf16>
    %17 = vector.shape_cast %14 : vector<8x8xbf16> to vector<1x1x8x8xbf16>
    tpu.vector_store %arg6[%c0_10, %c0_11, %c0_12, %c0_13], %17 {strides = array<i32>} : memref<1x1x8x8xbf16, #tpu.memory_space<vmem>>, vector<1x1x8x8xbf16>,
    %18 = arith.truncf %9 : vector<8x8xf32> to vector<8x8xbf16>
    %c0_14 = arith.constant 0 : index
    %c0_15 = arith.constant 0 : index
    %c0_16 = arith.constant 0 : index
    %c0_17 = arith.constant 0 : index
    %19 = vector.load %arg7[%c0_14, %c0_15, %c0_16, %c0_17] : memref<1x1x8x8xbf16, #tpu.memory_space<vmem>>, vector<1x1x8x8xbf16>
    %20 = vector.shape_cast %19 : vector<1x1x8x8xbf16> to vector<8x8xbf16>
    %21 = vector.shape_cast %18 : vector<8x8xbf16> to vector<1x1x8x8xbf16>
    tpu.vector_store %arg7[%c0_14, %c0_15, %c0_16, %c0_17], %21 {strides = array<i32>} : memref<1x1x8x8xbf16, #tpu.memory_space<vmem>>, vector<1x1x8x8xbf16>,
    return
  }
  func.func @transform_0(%arg0: i32, %arg1: i32, %arg2: i32) -> (i32, i32, i32) {
    %c0_i32 = arith.constant 0 : i32
    %c0_i32_0 = arith.constant 0 : i32
    return %arg1, %arg2, %c0_i32 : i32, i32, i32
  }
  func.func @transform_1(%arg0: i32, %arg1: i32, %arg2: i32) -> (i32, i32, i32) {
    %c0_i32 = arith.constant 0 : i32
    %c0_i32_0 = arith.constant 0 : i32
    %c0_i32_1 = arith.constant 0 : i32
    return %arg0, %c0_i32, %c0_i32_0 : i32, i32, i32
  }
  func.func @transform_2(%arg0: i32, %arg1: i32, %arg2: i32) -> (i32, i32, i32, i32) {
    %c0_i32 = arith.constant 0 : i32
    %c0_i32_0 = arith.constant 0 : i32
    return %arg1, %arg0, %arg2, %c0_i32 : i32, i32, i32, i32
  }
  func.func @transform_3(%arg0: i32, %arg1: i32, %arg2: i32) -> (i32, i32, i32, i32) {
    %c0_i32 = arith.constant 0 : i32
    %c0_i32_0 = arith.constant 0 : i32
    return %arg1, %arg0, %arg2, %c0_i32 : i32, i32, i32, i32
  }
  func.func @transform_4(%arg0: i32, %arg1: i32, %arg2: i32) -> (i32, i32, i32, i32) {
    %c0_i32 = arith.constant 0 : i32
    %c0_i32_0 = arith.constant 0 : i32
    return %arg1, %arg0, %arg2, %c0_i32 : i32, i32, i32, i32
  }
}

module attributes {stable_mosaic.version = 11 : i64} {
  func.func @flash_attn_oproj_kernel(%arg0: i32, %arg1: i32, %arg2: i32, %arg3: i32, %arg4: memref<1x1x8x8xbf16, #tpu.memory_space<vmem>>, %arg5: memref<1x1x8x8xbf16, #tpu.memory_space<vmem>>, %arg6: memref<1x1x8x8xbf16, #tpu.memory_space<vmem>>, %arg7: memref<1x8x32xbf16, #tpu.memory_space<vmem>>, %arg8: memref<1x8x32xf32, #tpu.memory_space<vmem>>, %arg9: memref<8x1xf32, #tpu.memory_space<vmem>>, %arg10: memref<8x1xf32, #tpu.memory_space<vmem>>, %arg11: memref<8x8xf32, #tpu.memory_space<vmem>>, %arg12: memref<8x32xf32, #tpu.memory_space<vmem>>) attributes {dimension_semantics = [#tpu.dimension_semantics<parallel>, #tpu.dimension_semantics<parallel>, #tpu.dimension_semantics<arbitrary>, #tpu.dimension_semantics<arbitrary>], iteration_bounds = array<i64: 2, 1, 4, 1>, scalar_prefetch = 0 : i64, scratch_operands = 4 : i64, tpu.core_type = #tpu.core_type<tc>, window_params = [{transform_indices = @transform_0, window_bounds = array<i64: 1, 1, 8, 8>}, {transform_indices = @transform_1, window_bounds = array<i64: 1, 1, 8, 8>}, {transform_indices = @transform_2, window_bounds = array<i64: 1, 1, 8, 8>}, {transform_indices = @transform_3, window_bounds = array<i64: 1, 8, 32>}, {transform_indices = @transform_4, window_bounds = array<i64: 1, 8, 32>}]} {
    %c0_i32 = arith.constant 0 : i32
    %0 = arith.cmpi eq, %arg3, %c0_i32 : i32
    %1 = arith.extui %0 : i1 to i32
    %c0_i32_0 = arith.constant 0 : i32
    %2 = arith.cmpi ne, %1, %c0_i32_0 : i32
    scf.if %2 {
      %cst_34 = arith.constant 0xFF800000 : f32
      %46 = vector.broadcast %cst_34 : f32 to vector<8x1xf32>
      %c0_35 = arith.constant 0 : index
      %c0_36 = arith.constant 0 : index
      %47 = vector.load %arg9[%c0_35, %c0_36] : memref<8x1xf32, #tpu.memory_space<vmem>>, vector<8x1xf32>
      tpu.vector_store %arg9[%c0_35, %c0_36], %46 {strides = array<i32>} : memref<8x1xf32, #tpu.memory_space<vmem>>, vector<8x1xf32>,
      %cst_37 = arith.constant 0.000000e+00 : f32
      %48 = vector.broadcast %cst_37 : f32 to vector<8x1xf32>
      %c0_38 = arith.constant 0 : index
      %c0_39 = arith.constant 0 : index
      %49 = vector.load %arg10[%c0_38, %c0_39] : memref<8x1xf32, #tpu.memory_space<vmem>>, vector<8x1xf32>
      tpu.vector_store %arg10[%c0_38, %c0_39], %48 {strides = array<i32>} : memref<8x1xf32, #tpu.memory_space<vmem>>, vector<8x1xf32>,
      %cst_40 = arith.constant 0.000000e+00 : f32
      %50 = vector.broadcast %cst_40 : f32 to vector<8x8xf32>
      %c0_41 = arith.constant 0 : index
      %c0_42 = arith.constant 0 : index
      %51 = vector.load %arg11[%c0_41, %c0_42] : memref<8x8xf32, #tpu.memory_space<vmem>>, vector<8x8xf32>
      tpu.vector_store %arg11[%c0_41, %c0_42], %50 {strides = array<i32>} : memref<8x8xf32, #tpu.memory_space<vmem>>, vector<8x8xf32>,
    } else {
    }
    %c0_i32_1 = arith.constant 0 : i32
    %3 = arith.cmpi eq, %arg3, %c0_i32_1 : i32
    %c0_i32_2 = arith.constant 0 : i32
    %4 = arith.cmpi eq, %arg2, %c0_i32_2 : i32
    %5 = arith.andi %3, %4 : i1
    %6 = arith.extui %5 : i1 to i32
    %c0_i32_3 = arith.constant 0 : i32
    %7 = arith.cmpi ne, %6, %c0_i32_3 : i32
    scf.if %7 {
      %cst_34 = arith.constant 0.000000e+00 : f32
      %46 = vector.broadcast %cst_34 : f32 to vector<8x32xf32>
      %c0_35 = arith.constant 0 : index
      %c0_36 = arith.constant 0 : index
      %47 = vector.load %arg12[%c0_35, %c0_36] : memref<8x32xf32, #tpu.memory_space<vmem>>, vector<8x32xf32>
      tpu.vector_store %arg12[%c0_35, %c0_36], %46 {strides = array<i32>} : memref<8x32xf32, #tpu.memory_space<vmem>>, vector<8x32xf32>,
    } else {
    }
    %c0 = arith.constant 0 : index
    %c0_4 = arith.constant 0 : index
    %c0_5 = arith.constant 0 : index
    %c0_6 = arith.constant 0 : index
    %8 = vector.load %arg4[%c0, %c0_4, %c0_5, %c0_6] : memref<1x1x8x8xbf16, #tpu.memory_space<vmem>>, vector<1x1x8x8xbf16>
    %9 = vector.shape_cast %8 : vector<1x1x8x8xbf16> to vector<8x8xbf16>
    %c0_7 = arith.constant 0 : index
    %c0_8 = arith.constant 0 : index
    %c0_9 = arith.constant 0 : index
    %c0_10 = arith.constant 0 : index
    %10 = vector.load %arg5[%c0_7, %c0_8, %c0_9, %c0_10] : memref<1x1x8x8xbf16, #tpu.memory_space<vmem>>, vector<1x1x8x8xbf16>
    %11 = vector.shape_cast %10 : vector<1x1x8x8xbf16> to vector<8x8xbf16>
    %c0_11 = arith.constant 0 : index
    %c0_12 = arith.constant 0 : index
    %c0_13 = arith.constant 0 : index
    %c0_14 = arith.constant 0 : index
    %12 = vector.load %arg6[%c0_11, %c0_12, %c0_13, %c0_14] : memref<1x1x8x8xbf16, #tpu.memory_space<vmem>>, vector<1x1x8x8xbf16>
    %13 = vector.shape_cast %12 : vector<1x1x8x8xbf16> to vector<8x8xbf16>
    %cst = arith.constant dense<0.000000e+00> : vector<8x8xf32>
    %14 = tpu.matmul %9, %11, %cst {dimension_numbers = #tpu.dot_dimension_numbers<[1], [1], [0], [0], [0, 0, 1, 0], [], []>} : vector<8x8xbf16>, vector<8x8xbf16>, vector<8x8xf32> -> vector<8x8xf32>
    %c0_15 = arith.constant 0 : index
    %c0_16 = arith.constant 0 : index
    %15 = vector.load %arg9[%c0_15, %c0_16] : memref<8x1xf32, #tpu.memory_space<vmem>>, vector<8x1xf32>
    %cst_17 = arith.constant dense<0xFF800000> : vector<8xf32>
    %16 = vector.multi_reduction <maximumf>, %14, %cst_17 [1] : vector<8x8xf32> to vector<8xf32>
    %17 = vector.shape_cast %16 : vector<8xf32> to vector<8x1xf32>
    %18 = arith.maximumf %15, %17 : vector<8x1xf32>
    %19 = arith.subf %15, %18 : vector<8x1xf32>
    %20 = math.exp %19 : vector<8x1xf32>
    %21 = vector.broadcast %18 : vector<8x1xf32> to vector<8x8xf32>
    %22 = arith.subf %14, %21 : vector<8x8xf32>
    %23 = math.exp %22 : vector<8x8xf32>
    %c0_18 = arith.constant 0 : index
    %c0_19 = arith.constant 0 : index
    %24 = vector.load %arg10[%c0_18, %c0_19] : memref<8x1xf32, #tpu.memory_space<vmem>>, vector<8x1xf32>
    %25 = arith.mulf %20, %24 : vector<8x1xf32>
    %cst_20 = arith.constant dense<0.000000e+00> : vector<8xf32>
    %26 = vector.multi_reduction <add>, %23, %cst_20 [1] : vector<8x8xf32> to vector<8xf32>
    %27 = vector.shape_cast %26 : vector<8xf32> to vector<8x1xf32>
    %28 = arith.addf %25, %27 : vector<8x1xf32>
    %c0_21 = arith.constant 0 : index
    %c0_22 = arith.constant 0 : index
    %29 = vector.load %arg10[%c0_21, %c0_22] : memref<8x1xf32, #tpu.memory_space<vmem>>, vector<8x1xf32>
    tpu.vector_store %arg10[%c0_21, %c0_22], %28 {strides = array<i32>} : memref<8x1xf32, #tpu.memory_space<vmem>>, vector<8x1xf32>,
    %c0_23 = arith.constant 0 : index
    %c0_24 = arith.constant 0 : index
    %30 = vector.load %arg11[%c0_23, %c0_24] : memref<8x8xf32, #tpu.memory_space<vmem>>, vector<8x8xf32>
    %31 = vector.broadcast %20 : vector<8x1xf32> to vector<8x8xf32>
    %32 = arith.mulf %31, %30 : vector<8x8xf32>
    %33 = arith.truncf %23 : vector<8x8xf32> to vector<8x8xbf16>
    %cst_25 = arith.constant dense<0.000000e+00> : vector<8x8xf32>
    %34 = tpu.matmul %33, %13, %cst_25 {dimension_numbers = #tpu.dot_dimension_numbers<[1], [0], [0], [1], [0, 0, 1, 1], [], []>} : vector<8x8xbf16>, vector<8x8xbf16>, vector<8x8xf32> -> vector<8x8xf32>
    %35 = arith.addf %32, %34 : vector<8x8xf32>
    %c0_26 = arith.constant 0 : index
    %c0_27 = arith.constant 0 : index
    %36 = vector.load %arg11[%c0_26, %c0_27] : memref<8x8xf32, #tpu.memory_space<vmem>>, vector<8x8xf32>
    tpu.vector_store %arg11[%c0_26, %c0_27], %35 {strides = array<i32>} : memref<8x8xf32, #tpu.memory_space<vmem>>, vector<8x8xf32>,
    %c0_28 = arith.constant 0 : index
    %c0_29 = arith.constant 0 : index
    %37 = vector.load %arg9[%c0_28, %c0_29] : memref<8x1xf32, #tpu.memory_space<vmem>>, vector<8x1xf32>
    tpu.vector_store %arg9[%c0_28, %c0_29], %18 {strides = array<i32>} : memref<8x1xf32, #tpu.memory_space<vmem>>, vector<8x1xf32>,
    %c0_i32_30 = arith.constant 0 : i32
    %38 = arith.cmpi eq, %arg3, %c0_i32_30 : i32
    %39 = arith.extui %38 : i1 to i32
    %c0_i32_31 = arith.constant 0 : i32
    %40 = arith.cmpi ne, %39, %c0_i32_31 : i32
    scf.if %40 {
      %c0_34 = arith.constant 0 : index
      %c0_35 = arith.constant 0 : index
      %46 = vector.load %arg10[%c0_34, %c0_35] : memref<8x1xf32, #tpu.memory_space<vmem>>, vector<8x1xf32>
      %47 = tpu.reciprocal %46 {approx = true} : vector<8x1xf32> -> vector<8x1xf32>
      %cst_36 = arith.constant 2.000000e+00 : f32
      %48 = vector.broadcast %cst_36 : f32 to vector<8x1xf32>
      %49 = arith.mulf %47, %48 : vector<8x1xf32>
      %c0_37 = arith.constant 0 : index
      %c0_38 = arith.constant 0 : index
      %50 = vector.load %arg11[%c0_37, %c0_38] : memref<8x8xf32, #tpu.memory_space<vmem>>, vector<8x8xf32>
      %51 = vector.broadcast %49 : vector<8x1xf32> to vector<8x8xf32>
      %52 = arith.mulf %50, %51 : vector<8x8xf32>
      %53 = arith.truncf %52 : vector<8x8xf32> to vector<8x8xbf16>
      %c0_39 = arith.constant 0 : index
      %c0_40 = arith.constant 0 : index
      %54 = vector.load %arg12[%c0_39, %c0_40] : memref<8x32xf32, #tpu.memory_space<vmem>>, vector<8x32xf32>
      %c0_41 = arith.constant 0 : index
      %c0_42 = arith.constant 0 : index
      %c0_43 = arith.constant 0 : index
      %55 = vector.load %arg7[%c0_41, %c0_42, %c0_43] : memref<1x8x32xbf16, #tpu.memory_space<vmem>>, vector<1x8x32xbf16>
      %56 = vector.shape_cast %55 : vector<1x8x32xbf16> to vector<8x32xbf16>
      %cst_44 = arith.constant dense<0.000000e+00> : vector<8x32xf32>
      %57 = tpu.matmul %53, %56, %cst_44 {dimension_numbers = #tpu.dot_dimension_numbers<[1], [0], [0], [1], [0, 0, 1, 1], [], []>} : vector<8x8xbf16>, vector<8x32xbf16>, vector<8x32xf32> -> vector<8x32xf32>
      %58 = arith.addf %54, %57 : vector<8x32xf32>
      %c0_45 = arith.constant 0 : index
      %c0_46 = arith.constant 0 : index
      %59 = vector.load %arg12[%c0_45, %c0_46] : memref<8x32xf32, #tpu.memory_space<vmem>>, vector<8x32xf32>
      tpu.vector_store %arg12[%c0_45, %c0_46], %58 {strides = array<i32>} : memref<8x32xf32, #tpu.memory_space<vmem>>, vector<8x32xf32>,
    } else {
    }
    %c0_i32_32 = arith.constant 0 : i32
    %41 = arith.cmpi eq, %arg3, %c0_i32_32 : i32
    %c3_i32 = arith.constant 3 : i32
    %42 = arith.cmpi eq, %arg2, %c3_i32 : i32
    %43 = arith.andi %41, %42 : i1
    %44 = arith.extui %43 : i1 to i32
    %c0_i32_33 = arith.constant 0 : i32
    %45 = arith.cmpi ne, %44, %c0_i32_33 : i32
    scf.if %45 {
      %c0_34 = arith.constant 0 : index
      %c0_35 = arith.constant 0 : index
      %46 = vector.load %arg12[%c0_34, %c0_35] : memref<8x32xf32, #tpu.memory_space<vmem>>, vector<8x32xf32>
      %c0_36 = arith.constant 0 : index
      %c0_37 = arith.constant 0 : index
      %c0_38 = arith.constant 0 : index
      %47 = vector.load %arg8[%c0_36, %c0_37, %c0_38] : memref<1x8x32xf32, #tpu.memory_space<vmem>>, vector<1x8x32xf32>
      %48 = vector.shape_cast %47 : vector<1x8x32xf32> to vector<8x32xf32>
      %49 = vector.shape_cast %46 : vector<8x32xf32> to vector<1x8x32xf32>
      tpu.vector_store %arg8[%c0_36, %c0_37, %c0_38], %49 {strides = array<i32>} : memref<1x8x32xf32, #tpu.memory_space<vmem>>, vector<1x8x32xf32>,
    } else {
    }
    return
  }
  func.func @transform_0(%arg0: i32, %arg1: i32, %arg2: i32, %arg3: i32) -> (i32, i32, i32, i32) {
    %c0_i32 = arith.constant 0 : i32
    %c0_i32_0 = arith.constant 0 : i32
    return %arg0, %arg2, %arg1, %c0_i32 : i32, i32, i32, i32
  }
  func.func @transform_1(%arg0: i32, %arg1: i32, %arg2: i32, %arg3: i32) -> (i32, i32, i32, i32) {
    %c0_i32 = arith.constant 0 : i32
    %c0_i32_0 = arith.constant 0 : i32
    return %arg0, %arg2, %arg3, %c0_i32 : i32, i32, i32, i32
  }
  func.func @transform_2(%arg0: i32, %arg1: i32, %arg2: i32, %arg3: i32) -> (i32, i32, i32, i32) {
    %c0_i32 = arith.constant 0 : i32
    %c0_i32_0 = arith.constant 0 : i32
    return %arg0, %arg2, %arg3, %c0_i32 : i32, i32, i32, i32
  }
  func.func @transform_3(%arg0: i32, %arg1: i32, %arg2: i32, %arg3: i32) -> (i32, i32, i32) {
    %c0_i32 = arith.constant 0 : i32
    %c0_i32_0 = arith.constant 0 : i32
    %c0_i32_1 = arith.constant 0 : i32
    return %arg2, %c0_i32, %c0_i32_0 : i32, i32, i32
  }
  func.func @transform_4(%arg0: i32, %arg1: i32, %arg2: i32, %arg3: i32) -> (i32, i32, i32) {
    %c0_i32 = arith.constant 0 : i32
    %c0_i32_0 = arith.constant 0 : i32
    return %arg0, %arg1, %c0_i32 : i32, i32, i32
  }
}

</mosaic_0001>

<llo_original>
// kernel: multi_head_attention.2
$region0: #{multi_head_attention.2}
  #allocation0 [shape = 'u32[]', space=smem, size = 0x4, offset = 0x4, fixed_abs, tag = 'smem constant byte address 0x4 - core index']
  #allocation1 [shape = 'u32[144,128]{1,0:T(1,128)}', space=vmem, size = 0x12000, scoped, tag = 'internal scratch']
  %s0 = inlined_call_operand.vmem [shape: bf16[2,8,32], index: 0, kind: input, shape index: {}]
  %s1 = inlined_call_operand.vmem [shape: bf16[4,32,24], index: 1, kind: input, shape index: {}]
  %s2 = inlined_call_operand.vmem [shape: bf16[2,4,8,8], index: 2, kind: output, shape index: {0}]
  %s3 = inlined_call_operand.vmem [shape: bf16[2,4,8,8], index: 3, kind: output, shape index: {1}]
  %s4 = inlined_call_operand.vmem [shape: bf16[2,4,8,8], index: 4, kind: output, shape index: {2}]
  %5 = xla_tuple %s2, %s3, %s4
  %s6 = sld [smem:[#allocation0]]
  $region57: #{multi_head_attention.2} parent=0
    _
  %s8 = ssub.s32 1, %s6
  %s9 = scalar_select 0, %s8, %s6
  loop: start=0, step=1, limit=10
  $region2: #{multi_head_attention.2} parent=0 // loop_pre_header
    _
  $region3: #{multi_head_attention.2} parent=0 // loop_header
    %s11 = sphi 0, %s15
    %p12 = scmp.ge.s32.totalorder %s11, 10
    %s18 = sphi 0, %s37
    %s19 = sphi 0, %s33
    %s20 = sphi 0, %s29
    %s21 = sphi 0, %s18
    %s22 = sphi 0, %s19
    %s23 = sphi 0, %s20
    %s24 = sphi 0, %s21
    %s25 = sphi 0, %s22
    %s26 = sphi 0, %s23
    %s42 = sphi 0, %s44
    %s45 = sphi 0, %s42
    %s46 = sphi 0, %s45
    %s62 = sphi 0, %s46
    %s68 = sphi 0, %s70
    %s71 = sphi 0, %s68
    %s72 = sphi 0, %s71
    %s88 = sphi 0, %s72
    %s98 = sphi 0, %s100
    %s101 = sphi 0, %s98
    %s102 = sphi 0, %s101
    %s118 = sphi 0, %s102
    %s128 = sphi 0, %s130
    %s131 = sphi 0, %s128
    %s132 = sphi 0, %s131
    %s148 = sphi 0, %s132
    %s158 = sphi 0, %s160
    %s161 = sphi 0, %s158
    %s162 = sphi 0, %s161
    %s178 = sphi 0, %s162
  $region4: #{multi_head_attention.2} parent=0 // loop_header_branch
    %14 = sbr.rel (%p12) target = $region8
  $region5: #{multi_head_attention.2} parent=0 // loop_body
    %s16 = ssub.s32 %s11, 1
    %s17 = ssub.s32 %s11, 2
    %s27 = sadd.s32 1, %s20
    %p28 = scmp.ge.s32.totalorder %s27, 1
    %s29 = scalar_select %p28, 0, %s27
    %s30 = sadd.s32 1, %s19
    %s31 = scalar_select %p28, %s30, %s19
    %p32 = scmp.ge.s32.totalorder %s31, 2
    %s33 = scalar_select %p32, 0, %s31
    %s34 = sadd.s32 1, %s18
    %s35 = scalar_select %p32, %s34, %s18
    %p36 = scmp.ge.s32.totalorder %s35, 4
    %s37 = scalar_select %p36, 0, %s35
    %s38 = ssub.s32 %s19, %s33
    %s39 = ssub.s32 %s20, %s29
    %s40 = sor.u32 %s38, %s39
    %p41 = scmp.eq.s32.totalorder %s40, 0
    %s43 = sadd.s32 %s42, 1
    %s44 = scalar_select %p41, %s42, %s43
    %p47 = pneg %p41
    %p48 = scmp.eq.s32.totalorder %s11, 7
    %p49 = por %p47, %p48
    %p50 = scmp.ne.s32.totalorder %s42, %s45
    %p51 = scmp.eq.s32.totalorder %s11, 0
    %p52 = por %p50, %p51
    %p53 = scmp.ne.s32.totalorder %s42, %s45
    %p54 = scmp.eq.s32.totalorder %s16, 7
    %p55 = por %p53, %p54
    %p56 = scmp.ne.s32.totalorder %s45, %s46
    %p57 = scmp.eq.s32.totalorder %s16, 0
    %p58 = por %p56, %p57
    %p59 = scmp.ne.s32.totalorder %s45, %s46
    %p60 = scmp.eq.s32.totalorder %s17, 7
    %p61 = por %p59, %p60
    %p63 = scmp.ne.s32.totalorder %s46, %s62
    %p64 = scmp.eq.s32.totalorder %s17, 0
    %p65 = por %p63, %p64
    %s66 = ssub.s32 %s18, %s37
    %p67 = scmp.eq.s32.totalorder %s66, 0
    %s69 = sadd.s32 %s68, 1
    %s70 = scalar_select %p67, %s68, %s69
    %p73 = pneg %p67
    %p74 = scmp.eq.s32.totalorder %s11, 7
    %p75 = por %p73, %p74
    %p76 = scmp.ne.s32.totalorder %s68, %s71
    %p77 = scmp.eq.s32.totalorder %s11, 0
    %p78 = por %p76, %p77
    %p79 = scmp.ne.s32.totalorder %s68, %s71
    %p80 = scmp.eq.s32.totalorder %s16, 7
    %p81 = por %p79, %p80
    %p82 = scmp.ne.s32.totalorder %s71, %s72
    %p83 = scmp.eq.s32.totalorder %s16, 0
    %p84 = por %p82, %p83
    %p85 = scmp.ne.s32.totalorder %s71, %s72
    %p86 = scmp.eq.s32.totalorder %s17, 7
    %p87 = por %p85, %p86
    %p89 = scmp.ne.s32.totalorder %s72, %s88
    %p90 = scmp.eq.s32.totalorder %s17, 0
    %p91 = por %p89, %p90
    %s92 = ssub.s32 %s19, %s33
    %s93 = ssub.s32 %s18, %s37
    %s94 = sor.u32 %s92, %s93
    %s95 = ssub.s32 %s20, %s29
    %s96 = sor.u32 %s94, %s95
    %p97 = scmp.eq.s32.totalorder %s96, 0
    %s99 = sadd.s32 %s98, 1
    %s100 = scalar_select %p97, %s98, %s99
    %p103 = pneg %p97
    %p104 = scmp.eq.s32.totalorder %s11, 7
    %p105 = por %p103, %p104
    %p106 = scmp.ne.s32.totalorder %s98, %s101
    %p107 = scmp.eq.s32.totalorder %s11, 0
    %p108 = por %p106, %p107
    %p109 = scmp.ne.s32.totalorder %s98, %s101
    %p110 = scmp.eq.s32.totalorder %s16, 7
    %p111 = por %p109, %p110
    %p112 = scmp.ne.s32.totalorder %s101, %s102
    %p113 = scmp.eq.s32.totalorder %s16, 0
    %p114 = por %p112, %p113
    %p115 = scmp.ne.s32.totalorder %s101, %s102
    %p116 = scmp.eq.s32.totalorder %s17, 7
    %p117 = por %p115, %p116
    %p119 = scmp.ne.s32.totalorder %s102, %s118
    %p120 = scmp.eq.s32.totalorder %s17, 0
    %p121 = por %p119, %p120
    %s122 = ssub.s32 %s19, %s33
    %s123 = ssub.s32 %s18, %s37
    %s124 = sor.u32 %s122, %s123
    %s125 = ssub.s32 %s20, %s29
    %s126 = sor.u32 %s124, %s125
    %p127 = scmp.eq.s32.totalorder %s126, 0
    %s129 = sadd.s32 %s128, 1
    %s130 = scalar_select %p127, %s128, %s129
    %p133 = pneg %p127
    %p134 = scmp.eq.s32.totalorder %s11, 7
    %p135 = por %p133, %p134
    %p136 = scmp.ne.s32.totalorder %s128, %s131
    %p137 = scmp.eq.s32.totalorder %s11, 0
    %p138 = por %p136, %p137
    %p139 = scmp.ne.s32.totalorder %s128, %s131
    %p140 = scmp.eq.s32.totalorder %s16, 7
    %p141 = por %p139, %p140
    %p142 = scmp.ne.s32.totalorder %s131, %s132
    %p143 = scmp.eq.s32.totalorder %s16, 0
    %p144 = por %p142, %p143
    %p145 = scmp.ne.s32.totalorder %s131, %s132
    %p146 = scmp.eq.s32.totalorder %s17, 7
    %p147 = por %p145, %p146
    %p149 = scmp.ne.s32.totalorder %s132, %s148
    %p150 = scmp.eq.s32.totalorder %s17, 0
    %p151 = por %p149, %p150
    %s152 = ssub.s32 %s19, %s33
    %s153 = ssub.s32 %s18, %s37
    %s154 = sor.u32 %s152, %s153
    %s155 = ssub.s32 %s20, %s29
    %s156 = sor.u32 %s154, %s155
    %p157 = scmp.eq.s32.totalorder %s156, 0
    %s159 = sadd.s32 %s158, 1
    %s160 = scalar_select %p157, %s158, %s159
    %p163 = pneg %p157
    %p164 = scmp.eq.s32.totalorder %s11, 7
    %p165 = por %p163, %p164
    %p166 = scmp.ne.s32.totalorder %s158, %s161
    %p167 = scmp.eq.s32.totalorder %s11, 0
    %p168 = por %p166, %p167
    %p169 = scmp.ne.s32.totalorder %s158, %s161
    %p170 = scmp.eq.s32.totalorder %s16, 7
    %p171 = por %p169, %p170
    %p172 = scmp.ne.s32.totalorder %s161, %s162
    %p173 = scmp.eq.s32.totalorder %s16, 0
    %p174 = por %p172, %p173
    %p175 = scmp.ne.s32.totalorder %s161, %s162
    %p176 = scmp.eq.s32.totalorder %s17, 7
    %p177 = por %p175, %p176
    %p179 = scmp.ne.s32.totalorder %s162, %s178
    %p180 = scmp.eq.s32.totalorder %s17, 0
    %p181 = por %p179, %p180
    %p182 = scmp.le.s32.totalorder 1, %s11
    %p183 = scmp.lt.s32.totalorder %s11, 9
    %p184 = pnand %p182, %p183
    %p185 = pneg %p184
    // Predicated region
    $region9: #{multi_head_attention.2} parent=5 // pred_check
      _
    $region10: #{multi_head_attention.2} parent=5 // pred_check_branch
      %187 = sbr.rel (%p184) target = $region12
    $region11: #{multi_head_attention.2} parent=5 // pred_region
      %s188 = ssub.s32 %s11, 1
    $region12: #{multi_head_attention.2} parent=5 // pred_fallthru
      _
    %p189 = scmp.lt.s32.totalorder %s11, 8
    // Predicated region
    $region13: #{multi_head_attention.2} parent=5 // pred_check
      %p190 = pneg %p189
    $region14: #{multi_head_attention.2} parent=5 // pred_check_branch
      %192 = sbr.rel (%p190) target = $region16
    $region15: #{multi_head_attention.2} parent=5 // pred_region
      // Predicated region
      $region17: #{multi_head_attention.2} parent=15 // pred_check
        %p193 = pneg %p52
      $region18: #{multi_head_attention.2} parent=15 // pred_check_branch
        %195 = sbr.rel (%p193) target = $region20
      $region19: #{multi_head_attention.2} parent=15 // pred_region
        %p196 = scmp.lt.s32.totalorder %s19, 1
        %s197 = scalar_select %p196, %s19, 1
        %p198 = scmp.lt.s32.totalorder %s20, 0
        %s199 = scalar_select %p198, %s20, 0
        %s200 = sadd.s32 %s199, %s197
        %s201 = smul.addr %s200, 4
        %s202 = scalar_lea.vmem %s0, %s201
      $region20: #{multi_head_attention.2} parent=15 // pred_fallthru
        _
      // Predicated region
      $region21: #{multi_head_attention.2} parent=15 // pred_check
        %p203 = pneg %p78
      $region22: #{multi_head_attention.2} parent=15 // pred_check_branch
        %205 = sbr.rel (%p203) target = $region24
      $region23: #{multi_head_attention.2} parent=15 // pred_region
        %p206 = scmp.lt.s32.totalorder %s18, 3
        %s207 = scalar_select %p206, %s18, 3
        %s208 = smul.addr %s207, 4
        %s209 = smul.addr %s208, 4
        %s210 = scalar_lea.vmem %s1, %s209
      $region24: #{multi_head_attention.2} parent=15 // pred_fallthru
        _
    $region16: #{multi_head_attention.2} parent=5 // pred_fallthru
      _
    %p211 = scmp.le.s32.totalorder 1, %s11
    %p212 = scmp.lt.s32.totalorder %s11, 9
    %p213 = pnand %p211, %p212
    %p214 = pneg %p213
    // Predicated region
    $region25: #{multi_head_attention.2} parent=5 // pred_check
      _
    $region26: #{multi_head_attention.2} parent=5 // pred_check_branch
      %216 = sbr.rel (%p213) target = $region28
    $region27: #{multi_head_attention.2} parent=5 // pred_region
      %s217 = ssub.s32 %s11, 1
      %p218 = scmp.lt.s32.totalorder %s22, 1
      %s219 = scalar_select %p218, %s22, 1
      %p220 = scmp.lt.s32.totalorder %s23, 0
      %s221 = scalar_select %p220, %s23, 0
      %s222 = sadd.s32 %s221, %s219
      %s223 = smul.addr %s222, 4
      %s224 = scalar_lea.vmem %s0, %s223
      %p225 = pneg %p58
      %p226 = pneg %p55
      %p227 = scmp.lt.s32.totalorder %s21, 3
      %s228 = scalar_select %p227, %s21, 3
      %s229 = smul.addr %s228, 4
      %s230 = smul.addr %s229, 4
      %s231 = scalar_lea.vmem %s1, %s230
      %p232 = pneg %p84
      %p233 = pneg %p81
      %p234 = pneg %p114
      %p235 = pneg %p111
      %p236 = scmp.lt.s32.totalorder %s22, 1
      %s237 = scalar_select %p236, %s22, 1
      %p238 = scmp.lt.s32.totalorder %s21, 3
      %s239 = scalar_select %p238, %s21, 3
      %p240 = scmp.lt.s32.totalorder %s23, 0
      %s241 = scalar_select %p240, %s23, 0
      %s242 = sadd.s32 %s241, %s239
      %s243 = smul.addr %s237, 4
      %s244 = sadd.s32 %s242, %s243
      %s245 = smul.addr %s244, 4
      %s246 = scalar_lea.vmem %s2, %s245
      %p247 = pneg %p144
      %p248 = pneg %p141
      %p249 = scmp.lt.s32.totalorder %s22, 1
      %s250 = scalar_select %p249, %s22, 1
      %p251 = scmp.lt.s32.totalorder %s21, 3
      %s252 = scalar_select %p251, %s21, 3
      %p253 = scmp.lt.s32.totalorder %s23, 0
      %s254 = scalar_select %p253, %s23, 0
      %s255 = sadd.s32 %s254, %s252
      %s256 = smul.addr %s250, 4
      %s257 = sadd.s32 %s255, %s256
      %s258 = smul.addr %s257, 4
      %s259 = scalar_lea.vmem %s3, %s258
      %p260 = pneg %p174
      %p261 = pneg %p171
      %p262 = scmp.lt.s32.totalorder %s22, 1
      %s263 = scalar_select %p262, %s22, 1
      %p264 = scmp.lt.s32.totalorder %s21, 3
      %s265 = scalar_select %p264, %s21, 3
      %p266 = scmp.lt.s32.totalorder %s23, 0
      %s267 = scalar_select %p266, %s23, 0
      %s268 = sadd.s32 %s267, %s265
      %s269 = smul.addr %s263, 4
      %s270 = sadd.s32 %s268, %s269
      %s271 = smul.addr %s270, 4
      %s272 = scalar_lea.vmem %s4, %s271
      %p273 = scmp.lt.s32.totalorder %s22, 1
      %s274 = scalar_select %p273, %s22, 1
      %p275 = scmp.lt.s32.totalorder %s23, 0
      %s276 = scalar_select %p275, %s23, 0
      %s277 = sadd.s32 %s276, %s274
      %s278 = smul.addr %s277, 4
      %s279 = scalar_lea.vmem %s0, %s278
      %p280 = scmp.lt.s32.totalorder %s21, 3
      %s281 = scalar_select %p280, %s21, 3
      %s282 = smul.addr %s281, 4
      %s283 = smul.addr %s282, 4
      %s284 = scalar_lea.vmem %s1, %s283
      %p285 = scmp.lt.s32.totalorder %s22, 1
      %s286 = scalar_select %p285, %s22, 1
      %p287 = scmp.lt.s32.totalorder %s21, 3
      %s288 = scalar_select %p287, %s21, 3
      %p289 = scmp.lt.s32.totalorder %s23, 0
      %s290 = scalar_select %p289, %s23, 0
      %s291 = sadd.s32 %s290, %s288
      %s292 = smul.addr %s286, 4
      %s293 = sadd.s32 %s291, %s292
      %s294 = smul.addr %s293, 4
      %s295 = scalar_lea.vmem %s2, %s294
      %p296 = scmp.lt.s32.totalorder %s22, 1
      %s297 = scalar_select %p296, %s22, 1
      %p298 = scmp.lt.s32.totalorder %s21, 3
      %s299 = scalar_select %p298, %s21, 3
      %p300 = scmp.lt.s32.totalorder %s23, 0
      %s301 = scalar_select %p300, %s23, 0
      %s302 = sadd.s32 %s301, %s299
      %s303 = smul.addr %s297, 4
      %s304 = sadd.s32 %s302, %s303
      %s305 = smul.addr %s304, 4
      %s306 = scalar_lea.vmem %s3, %s305
      %p307 = scmp.lt.s32.totalorder %s22, 1
      %s308 = scalar_select %p307, %s22, 1
      %p309 = scmp.lt.s32.totalorder %s21, 3
      %s310 = scalar_select %p309, %s21, 3
      %p311 = scmp.lt.s32.totalorder %s23, 0
      %s312 = scalar_select %p311, %s23, 0
      %s313 = sadd.s32 %s312, %s310
      %s314 = smul.addr %s308, 4
      %s315 = sadd.s32 %s313, %s314
      %s316 = smul.addr %s315, 4
      %s317 = scalar_lea.vmem %s4, %s316
      %v319 = vld [vmem:[%s279] sm:$0xf]
      %v320 = vld [vmem:[%s284] sm:$0xf]
      %v321 = vld [vmem:[%s284 + $0x4] sm:$0xf]
      %v322 = vld [vmem:[%s284 + $0x8] sm:$0xf]
      %v323 = vld [vmem:[%s284 + $0xc] sm:$0xf]
      %v328 = vunpack.c.l.b16 %v320
      %v329 = vunpack.c.l.b16 %v321
      %v330 = vunpack.c.l.b16 %v322
      %v331 = vunpack.c.l.b16 %v323
      %v332 = vpack.c.b16 %v329, %v328
      %v333 = vpack.c.b16 %v331, %v330
      %vm336 = vcmask 261120
      %v338 = vsel %vm336, %v319, 0
      %340 = vmatprep.subr.bf16.mxu0 0
      %341 = vmatpush1.bf16.msra.mxu0 0
      %342 = vmatprep.subr.bf16.mxu0 0
      %343 = vmatpush1.bf16.msra.mxu0 0
      %344 = vmatprep.subr.bf16.mxu0 0
      %345 = vmatpush1.bf16.msra.mxu0 0
      %346 = vmatprep.subr.bf16.mxu0 0
      %347 = vmatpush1.bf16.msra.mxu0 0
      %348 = vmatprep.subr.bf16.mxu0 0
      %349 = vmatpush1.bf16.msra.mxu0 0
      %350 = vmatprep.subr.bf16.mxu0 0
      %351 = vmatpush1.bf16.msra.mxu0 0
      %352 = vmatprep.subr.bf16.mxu0 0
      %353 = vmatpush1.bf16.msra.mxu0 %v333
      %354 = vmatprep.subr.bf16.mxu0 0
      %355 = vmatpush1.bf16.msra.mxu0 %v332
      %356 = vmatprep.subr.bf16.mxu0 0
      %357 = vmatpush2.bf16.msra.mxu0 0
      %358 = vmatprep.subr.bf16.mxu0 0
      %359 = vmatpush2.bf16.msra.mxu0 0
      %360 = vmatprep.subr.bf16.mxu0 0
      %361 = vmatpush2.bf16.msra.mxu0 0
      %362 = vmatprep.subr.bf16.mxu0 0
      %363 = vmatpush2.bf16.msra.mxu0 0
      %364 = vmatprep.subr.bf16.mxu0 0
      %365 = vmatpush2.bf16.msra.mxu0 0
      %366 = vmatprep.subr.bf16.mxu0 0
      %367 = vmatpush2.bf16.msra.mxu0 0
      %368 = vmatprep.subr.bf16.mxu0 0
      %369 = vmatpush2.bf16.msra.mxu0 0
      %370 = vmatprep.subr.bf16.mxu0 0
      %371 = vmatpush2.bf16.msra.mxu0 0
      %372 = vmatprep.mubr.bf16.mxu0 0
      %373 = vmatmul.mubr.bf16.gmra.mxu0 %v338
      %v374 = vpop.f32.mrf.mxu0
      %v375 = vadd.f32 0.0, %v374
      %v376 = vpop.f32.mrf.mxu0
      %v377 = vpop.f32.mrf.mxu0
      %v378 = vpop.f32.mrf.mxu0
      %379 = vdwg.mxu0
      %v380 = vmul.f32 %v375, 0.35355338
      %v381 = vpack.c.bf16 %v380, %v380
      %vm382 = vcmask 60416
      %383 = vst.msk [vmem:[%s295] sm:$0xf] %vm382, %v381
      %v384 = vpack.c.bf16 %v375, %v375
      %v386 = vunpack.c.l.b16 %v384
      %v387 = vpack.c.b16 %v386, %v386
      %388 = vrot.lane.b32.xlu0 %v387, 120
      %v389 = vpop.permute.xlu0 %388
      %391 = vst.msk [vmem:[%s306] sm:$0xf] %vm382, %v389
      %392 = vrot.lane.b32.xlu0 %v387, 112
      %v393 = vpop.permute.xlu0 %392
      %395 = vst.msk [vmem:[%s317] sm:$0xf] %vm382, %v393
      %p396 = scmp.lt.s32.totalorder %s22, 1
      %s397 = scalar_select %p396, %s22, 1
      %p398 = scmp.lt.s32.totalorder %s21, 3
      %s399 = scalar_select %p398, %s21, 3
      %p400 = scmp.lt.s32.totalorder %s23, 0
      %s401 = scalar_select %p400, %s23, 0
      %s402 = sadd.s32 %s401, %s399
      %s403 = smul.addr %s397, 4
      %s404 = sadd.s32 %s402, %s403
      %s405 = smul.addr %s404, 4
      %s406 = scalar_lea.vmem %s2, %s405
      %p407 = scmp.lt.s32.totalorder %s22, 1
      %s408 = scalar_select %p407, %s22, 1
      %p409 = scmp.lt.s32.totalorder %s21, 3
      %s410 = scalar_select %p409, %s21, 3
      %p411 = scmp.lt.s32.totalorder %s23, 0
      %s412 = scalar_select %p411, %s23, 0
      %s413 = sadd.s32 %s412, %s410
      %s414 = smul.addr %s408, 4
      %s415 = sadd.s32 %s413, %s414
      %s416 = smul.addr %s415, 4
      %s417 = scalar_lea.vmem %s3, %s416
      %p418 = scmp.lt.s32.totalorder %s22, 1
      %s419 = scalar_select %p418, %s22, 1
      %p420 = scmp.lt.s32.totalorder %s21, 3
      %s421 = scalar_select %p420, %s21, 3
      %p422 = scmp.lt.s32.totalorder %s23, 0
      %s423 = scalar_select %p422, %s23, 0
      %s424 = sadd.s32 %s423, %s421
      %s425 = smul.addr %s419, 4
      %s426 = sadd.s32 %s424, %s425
      %s427 = smul.addr %s426, 4
      %s428 = scalar_lea.vmem %s4, %s427
      // Predicated region
      $region29: #{multi_head_attention.2} parent=27 // pred_check
        %p429 = pneg %p111
      $region30: #{multi_head_attention.2} parent=27 // pred_check_branch
        %431 = sbr.rel (%p429) target = $region32
      $region31: #{multi_head_attention.2} parent=27 // pred_region
        _
      $region32: #{multi_head_attention.2} parent=27 // pred_fallthru
        _
      // Predicated region
      $region33: #{multi_head_attention.2} parent=27 // pred_check
        %p432 = pneg %p141
      $region34: #{multi_head_attention.2} parent=27 // pred_check_branch
        %434 = sbr.rel (%p432) target = $region36
      $region35: #{multi_head_attention.2} parent=27 // pred_region
        _
      $region36: #{multi_head_attention.2} parent=27 // pred_fallthru
        _
      // Predicated region
      $region37: #{multi_head_attention.2} parent=27 // pred_check
        %p435 = pneg %p171
      $region38: #{multi_head_attention.2} parent=27 // pred_check_branch
        %437 = sbr.rel (%p435) target = $region40
      $region39: #{multi_head_attention.2} parent=27 // pred_region
        _
      $region40: #{multi_head_attention.2} parent=27 // pred_fallthru
        _
    $region28: #{multi_head_attention.2} parent=5 // pred_fallthru
      _
    %p438 = scmp.le.s32.totalorder 2, %s11
    // Predicated region
    $region41: #{multi_head_attention.2} parent=5 // pred_check
      %p439 = pneg %p438
    $region42: #{multi_head_attention.2} parent=5 // pred_check_branch
      %441 = sbr.rel (%p439) target = $region44
    $region43: #{multi_head_attention.2} parent=5 // pred_region
      %s442 = ssub.s32 %s11, 2
      // Predicated region
      $region45: #{multi_head_attention.2} parent=43 // pred_check
        %p443 = pneg %p117
      $region46: #{multi_head_attention.2} parent=43 // pred_check_branch
        %445 = sbr.rel (%p443) target = $region48
      $region47: #{multi_head_attention.2} parent=43 // pred_region
        %p446 = scmp.lt.s32.totalorder %s25, 1
        %s447 = scalar_select %p446, %s25, 1
        %p448 = scmp.lt.s32.totalorder %s24, 3
        %s449 = scalar_select %p448, %s24, 3
        %p450 = scmp.lt.s32.totalorder %s26, 0
        %s451 = scalar_select %p450, %s26, 0
        %s452 = sadd.s32 %s451, %s449
        %s453 = smul.addr %s447, 4
        %s454 = sadd.s32 %s452, %s453
        %s455 = smul.addr %s454, 4
        %s456 = scalar_lea.vmem %s2, %s455
      $region48: #{multi_head_attention.2} parent=43 // pred_fallthru
        _
      // Predicated region
      $region49: #{multi_head_attention.2} parent=43 // pred_check
        %p457 = pneg %p147
      $region50: #{multi_head_attention.2} parent=43 // pred_check_branch
        %459 = sbr.rel (%p457) target = $region52
      $region51: #{multi_head_attention.2} parent=43 // pred_region
        %p460 = scmp.lt.s32.totalorder %s25, 1
        %s461 = scalar_select %p460, %s25, 1
        %p462 = scmp.lt.s32.totalorder %s24, 3
        %s463 = scalar_select %p462, %s24, 3
        %p464 = scmp.lt.s32.totalorder %s26, 0
        %s465 = scalar_select %p464, %s26, 0
        %s466 = sadd.s32 %s465, %s463
        %s467 = smul.addr %s461, 4
        %s468 = sadd.s32 %s466, %s467
        %s469 = smul.addr %s468, 4
        %s470 = scalar_lea.vmem %s3, %s469
      $region52: #{multi_head_attention.2} parent=43 // pred_fallthru
        _
      // Predicated region
      $region53: #{multi_head_attention.2} parent=43 // pred_check
        %p471 = pneg %p177
      $region54: #{multi_head_attention.2} parent=43 // pred_check_branch
        %473 = sbr.rel (%p471) target = $region56
      $region55: #{multi_head_attention.2} parent=43 // pred_region
        %p474 = scmp.lt.s32.totalorder %s25, 1
        %s475 = scalar_select %p474, %s25, 1
        %p476 = scmp.lt.s32.totalorder %s24, 3
        %s477 = scalar_select %p476, %s24, 3
        %p478 = scmp.lt.s32.totalorder %s26, 0
        %s479 = scalar_select %p478, %s26, 0
        %s480 = sadd.s32 %s479, %s477
        %s481 = smul.addr %s475, 4
        %s482 = sadd.s32 %s480, %s481
        %s483 = smul.addr %s482, 4
        %s484 = scalar_lea.vmem %s4, %s483
      $region56: #{multi_head_attention.2} parent=43 // pred_fallthru
        _
    $region44: #{multi_head_attention.2} parent=5 // pred_fallthru
      _
  $region6: #{multi_head_attention.2} parent=0 // loop_footer
    %s15 = sadd.s32 1, %s11
  $region7: #{multi_head_attention.2} parent=0 // loop_footer_branch
    %10 = sbr.rel target = $region3
  $region8: #{multi_head_attention.2} parent=0 // loop_exit
    _

// kernel: multi_head_attention.3
$region0: #{multi_head_attention.3}
  #allocation0 [shape = 'u32[]', space=smem, size = 0x4, offset = 0x4, fixed_abs, tag = 'smem constant byte address 0x4 - core index']
  #allocation1 [shape = 'u32[144,128]{1,0:T(1,128)}', space=vmem, size = 0x12000, scoped, tag = 'internal scratch']
  #allocation2 [shape = 'f32[8,1]{1,0:T(8,128)}', space=vmem, size = 0x1000, scoped, tag = 'scratch operand']
  #allocation3 [shape = 'f32[8,1]{1,0:T(8,128)}', space=vmem, size = 0x1000, scoped, tag = 'scratch operand']
  #allocation4 [shape = 'f32[8,8]{1,0:T(8,128)}', space=vmem, size = 0x1000, scoped, tag = 'scratch operand']
  #allocation5 [shape = 'f32[8,32]{1,0:T(8,128)}', space=vmem, size = 0x1000, scoped, tag = 'scratch operand']
  %s0 = inlined_call_operand.vmem [shape: bf16[2,4,8,8], index: 0, kind: input, shape index: {}]
  %s1 = inlined_call_operand.vmem [shape: bf16[2,4,8,8], index: 1, kind: input, shape index: {}]
  %s2 = inlined_call_operand.vmem [shape: bf16[2,4,8,8], index: 2, kind: input, shape index: {}]
  %s3 = inlined_call_operand.vmem [shape: bf16[4,8,32], index: 3, kind: input, shape index: {}]
  %s4 = inlined_call_operand.hbm [shape: f32[2,8,32], index: 4, kind: output, shape index: {}]
  %s5 = sld [smem:[#allocation0]]
  $region65: #{multi_head_attention.3} parent=0
    _
  %s7 = ssub.s32 1, %s5
  %s8 = scalar_select 0, %s7, %s5
  $region1: #{multi_head_attention.3} parent=0
    #allocation6 [shape = 'u8[8192]{0}', space=vmem, size = 0x2000, scoped, tag = 'output window, operand 0']
    #allocation7 [shape = 's32[2]{0}', space=sflag, size = 0x8, scoped, tag = 'scoped memory for multi_head_attention.3']
    %9 = vsyncpa [#allocation7], 0
    %s10 = scalar_lea.sflag [#allocation7], 1
    %11 = vsyncpa %s10, 0
    loop: start=0, step=1, limit=10
    $region2: #{multi_head_attention.3} parent=1 // loop_pre_header
      _
    $region3: #{multi_head_attention.3} parent=1 // loop_header
      %s13 = sphi 0, %s17
      %p14 = scmp.ge.s32.totalorder %s13, 10
      %s20 = sphi 0, %s46
      %s21 = sphi 0, %s42
      %s22 = sphi 0, %s38
      %s23 = sphi 0, %s34
      %s24 = sphi 0, %s20
      %s25 = sphi 0, %s21
      %s26 = sphi 0, %s22
      %s27 = sphi 0, %s23
      %s28 = sphi 0, %s24
      %s29 = sphi 0, %s25
      %s30 = sphi 0, %s26
      %s31 = sphi 0, %s27
      %s53 = sphi 0, %s55
      %s56 = sphi 0, %s53
      %s57 = sphi 0, %s56
      %s73 = sphi 0, %s57
      %s83 = sphi 0, %s85
      %s86 = sphi 0, %s83
      %s87 = sphi 0, %s86
      %s103 = sphi 0, %s87
      %s113 = sphi 0, %s115
      %s116 = sphi 0, %s113
      %s117 = sphi 0, %s116
      %s133 = sphi 0, %s117
      %s139 = sphi 0, %s141
      %s142 = sphi 0, %s139
      %s143 = sphi 0, %s142
      %s159 = sphi 0, %s143
      %s167 = sphi 0, %s169
      %s170 = sphi 0, %s167
      %s171 = sphi 0, %s170
      %s187 = sphi 0, %s171
    $region4: #{multi_head_attention.3} parent=1 // loop_header_branch
      %16 = sbr.rel (%p14) target = $region8
    $region5: #{multi_head_attention.3} parent=1 // loop_body
      %s18 = ssub.s32 %s13, 1
      %s19 = ssub.s32 %s13, 2
      %s32 = sadd.s32 1, %s23
      %p33 = scmp.ge.s32.totalorder %s32, 1
      %s34 = scalar_select %p33, 0, %s32
      %s35 = sadd.s32 1, %s22
      %s36 = scalar_select %p33, %s35, %s22
      %p37 = scmp.ge.s32.totalorder %s36, 4
      %s38 = scalar_select %p37, 0, %s36
      %s39 = sadd.s32 1, %s21
      %s40 = scalar_select %p37, %s39, %s21
      %p41 = scmp.ge.s32.totalorder %s40, 1
      %s42 = scalar_select %p41, 0, %s40
      %s43 = sadd.s32 1, %s20
      %s44 = scalar_select %p41, %s43, %s20
      %p45 = scmp.ge.s32.totalorder %s44, 2
      %s46 = scalar_select %p45, 0, %s44
      %s47 = ssub.s32 %s20, %s46
      %s48 = ssub.s32 %s22, %s38
      %s49 = sor.u32 %s47, %s48
      %s50 = ssub.s32 %s21, %s42
      %s51 = sor.u32 %s49, %s50
      %p52 = scmp.eq.s32.totalorder %s51, 0
      %s54 = sadd.s32 %s53, 1
      %s55 = scalar_select %p52, %s53, %s54
      %p58 = pneg %p52
      %p59 = scmp.eq.s32.totalorder %s13, 7
      %p60 = por %p58, %p59
      %p61 = scmp.ne.s32.totalorder %s53, %s56
      %p62 = scmp.eq.s32.totalorder %s13, 0
      %p63 = por %p61, %p62
      %p64 = scmp.ne.s32.totalorder %s53, %s56
      %p65 = scmp.eq.s32.totalorder %s18, 7
      %p66 = por %p64, %p65
      %p67 = scmp.ne.s32.totalorder %s56, %s57
      %p68 = scmp.eq.s32.totalorder %s18, 0
      %p69 = por %p67, %p68
      %p70 = scmp.ne.s32.totalorder %s56, %s57
      %p71 = scmp.eq.s32.totalorder %s19, 7
      %p72 = por %p70, %p71
      %p74 = scmp.ne.s32.totalorder %s57, %s73
      %p75 = scmp.eq.s32.totalorder %s19, 0
      %p76 = por %p74, %p75
      %s77 = ssub.s32 %s20, %s46
      %s78 = ssub.s32 %s22, %s38
      %s79 = sor.u32 %s77, %s78
      %s80 = ssub.s32 %s23, %s34
      %s81 = sor.u32 %s79, %s80
      %p82 = scmp.eq.s32.totalorder %s81, 0
      %s84 = sadd.s32 %s83, 1
      %s85 = scalar_select %p82, %s83, %s84
      %p88 = pneg %p82
      %p89 = scmp.eq.s32.totalorder %s13, 7
      %p90 = por %p88, %p89
      %p91 = scmp.ne.s32.totalorder %s83, %s86
      %p92 = scmp.eq.s32.totalorder %s13, 0
      %p93 = por %p91, %p92
      %p94 = scmp.ne.s32.totalorder %s83, %s86
      %p95 = scmp.eq.s32.totalorder %s18, 7
      %p96 = por %p94, %p95
      %p97 = scmp.ne.s32.totalorder %s86, %s87
      %p98 = scmp.eq.s32.totalorder %s18, 0
      %p99 = por %p97, %p98
      %p100 = scmp.ne.s32.totalorder %s86, %s87
      %p101 = scmp.eq.s32.totalorder %s19, 7
      %p102 = por %p100, %p101
      %p104 = scmp.ne.s32.totalorder %s87, %s103
      %p105 = scmp.eq.s32.totalorder %s19, 0
      %p106 = por %p104, %p105
      %s107 = ssub.s32 %s20, %s46
      %s108 = ssub.s32 %s22, %s38
      %s109 = sor.u32 %s107, %s108
      %s110 = ssub.s32 %s23, %s34
      %s111 = sor.u32 %s109, %s110
      %p112 = scmp.eq.s32.totalorder %s111, 0
      %s114 = sadd.s32 %s113, 1
      %s115 = scalar_select %p112, %s113, %s114
      %p118 = pneg %p112
      %p119 = scmp.eq.s32.totalorder %s13, 7
      %p120 = por %p118, %p119
      %p121 = scmp.ne.s32.totalorder %s113, %s116
      %p122 = scmp.eq.s32.totalorder %s13, 0
      %p123 = por %p121, %p122
      %p124 = scmp.ne.s32.totalorder %s113, %s116
      %p125 = scmp.eq.s32.totalorder %s18, 7
      %p126 = por %p124, %p125
      %p127 = scmp.ne.s32.totalorder %s116, %s117
      %p128 = scmp.eq.s32.totalorder %s18, 0
      %p129 = por %p127, %p128
      %p130 = scmp.ne.s32.totalorder %s116, %s117
      %p131 = scmp.eq.s32.totalorder %s19, 7
      %p132 = por %p130, %p131
      %p134 = scmp.ne.s32.totalorder %s117, %s133
      %p135 = scmp.eq.s32.totalorder %s19, 0
      %p136 = por %p134, %p135
      %s137 = ssub.s32 %s22, %s38
      %p138 = scmp.eq.s32.totalorder %s137, 0
      %s140 = sadd.s32 %s139, 1
      %s141 = scalar_select %p138, %s139, %s140
      %p144 = pneg %p138
      %p145 = scmp.eq.s32.totalorder %s13, 7
      %p146 = por %p144, %p145
      %p147 = scmp.ne.s32.totalorder %s139, %s142
      %p148 = scmp.eq.s32.totalorder %s13, 0
      %p149 = por %p147, %p148
      %p150 = scmp.ne.s32.totalorder %s139, %s142
      %p151 = scmp.eq.s32.totalorder %s18, 7
      %p152 = por %p150, %p151
      %p153 = scmp.ne.s32.totalorder %s142, %s143
      %p154 = scmp.eq.s32.totalorder %s18, 0
      %p155 = por %p153, %p154
      %p156 = scmp.ne.s32.totalorder %s142, %s143
      %p157 = scmp.eq.s32.totalorder %s19, 7
      %p158 = por %p156, %p157
      %p160 = scmp.ne.s32.totalorder %s143, %s159
      %p161 = scmp.eq.s32.totalorder %s19, 0
      %p162 = por %p160, %p161
      %s163 = ssub.s32 %s20, %s46
      %s164 = ssub.s32 %s21, %s42
      %s165 = sor.u32 %s163, %s164
      %p166 = scmp.eq.s32.totalorder %s165, 0
      %s168 = sadd.s32 %s167, 1
      %s169 = scalar_select %p166, %s167, %s168
      %p172 = pneg %p166
      %p173 = scmp.eq.s32.totalorder %s13, 7
      %p174 = por %p172, %p173
      %p175 = scmp.ne.s32.totalorder %s167, %s170
      %p176 = scmp.eq.s32.totalorder %s13, 0
      %p177 = por %p175, %p176
      %p178 = scmp.ne.s32.totalorder %s167, %s170
      %p179 = scmp.eq.s32.totalorder %s18, 7
      %p180 = por %p178, %p179
      %p181 = scmp.ne.s32.totalorder %s170, %s171
      %p182 = scmp.eq.s32.totalorder %s18, 0
      %p183 = por %p181, %p182
      %p184 = scmp.ne.s32.totalorder %s170, %s171
      %p185 = scmp.eq.s32.totalorder %s19, 7
      %p186 = por %p184, %p185
      %p188 = scmp.ne.s32.totalorder %s171, %s187
      %p189 = scmp.eq.s32.totalorder %s19, 0
      %p190 = por %p188, %p189
      %p191 = scmp.le.s32.totalorder 1, %s13
      %p192 = scmp.lt.s32.totalorder %s13, 9
      %p193 = pnand %p191, %p192
      %p194 = pneg %p193
      // Predicated region
      $region9: #{multi_head_attention.3} parent=5 // pred_check
        _
      $region10: #{multi_head_attention.3} parent=5 // pred_check_branch
        %196 = sbr.rel (%p193) target = $region12
      $region11: #{multi_head_attention.3} parent=5 // pred_region
        %s197 = ssub.s32 %s13, 1
      $region12: #{multi_head_attention.3} parent=5 // pred_fallthru
        _
      %p198 = scmp.lt.s32.totalorder %s13, 8
      // Predicated region
      $region13: #{multi_head_attention.3} parent=5 // pred_check
        %p199 = pneg %p198
      $region14: #{multi_head_attention.3} parent=5 // pred_check_branch
        %201 = sbr.rel (%p199) target = $region16
      $region15: #{multi_head_attention.3} parent=5 // pred_region
        // Predicated region
        $region17: #{multi_head_attention.3} parent=15 // pred_check
          %p202 = pneg %p63
        $region18: #{multi_head_attention.3} parent=15 // pred_check_branch
          %204 = sbr.rel (%p202) target = $region20
        $region19: #{multi_head_attention.3} parent=15 // pred_region
          %p205 = scmp.lt.s32.totalorder %s20, 1
          %s206 = scalar_select %p205, %s20, 1
          %p207 = scmp.lt.s32.totalorder %s22, 3
          %s208 = scalar_select %p207, %s22, 3
          %p209 = scmp.lt.s32.totalorder %s21, 0
          %s210 = scalar_select %p209, %s21, 0
          %s211 = sadd.s32 %s210, %s208
          %s212 = smul.addr %s206, 4
          %s213 = sadd.s32 %s211, %s212
          %s214 = smul.addr %s213, 4
          %s215 = scalar_lea.vmem %s0, %s214
        $region20: #{multi_head_attention.3} parent=15 // pred_fallthru
          _
        // Predicated region
        $region21: #{multi_head_attention.3} parent=15 // pred_check
          %p216 = pneg %p93
        $region22: #{multi_head_attention.3} parent=15 // pred_check_branch
          %218 = sbr.rel (%p216) target = $region24
        $region23: #{multi_head_attention.3} parent=15 // pred_region
          %p219 = scmp.lt.s32.totalorder %s20, 1
          %s220 = scalar_select %p219, %s20, 1
          %p221 = scmp.lt.s32.totalorder %s22, 3
          %s222 = scalar_select %p221, %s22, 3
          %p223 = scmp.lt.s32.totalorder %s23, 0
          %s224 = scalar_select %p223, %s23, 0
          %s225 = sadd.s32 %s224, %s222
          %s226 = smul.addr %s220, 4
          %s227 = sadd.s32 %s225, %s226
          %s228 = smul.addr %s227, 4
          %s229 = scalar_lea.vmem %s1, %s228
        $region24: #{multi_head_attention.3} parent=15 // pred_fallthru
          _
        // Predicated region
        $region25: #{multi_head_attention.3} parent=15 // pred_check
          %p230 = pneg %p123
        $region26: #{multi_head_attention.3} parent=15 // pred_check_branch
          %232 = sbr.rel (%p230) target = $region28
        $region27: #{multi_head_attention.3} parent=15 // pred_region
          %p233 = scmp.lt.s32.totalorder %s20, 1
          %s234 = scalar_select %p233, %s20, 1
          %p235 = scmp.lt.s32.totalorder %s22, 3
          %s236 = scalar_select %p235, %s22, 3
          %p237 = scmp.lt.s32.totalorder %s23, 0
          %s238 = scalar_select %p237, %s23, 0
          %s239 = sadd.s32 %s238, %s236
          %s240 = smul.addr %s234, 4
          %s241 = sadd.s32 %s239, %s240
          %s242 = smul.addr %s241, 4
          %s243 = scalar_lea.vmem %s2, %s242
        $region28: #{multi_head_attention.3} parent=15 // pred_fallthru
          _
        // Predicated region
        $region29: #{multi_head_attention.3} parent=15 // pred_check
          %p244 = pneg %p149
        $region30: #{multi_head_attention.3} parent=15 // pred_check_branch
          %246 = sbr.rel (%p244) target = $region32
        $region31: #{multi_head_attention.3} parent=15 // pred_region
          %p247 = scmp.lt.s32.totalorder %s22, 3
          %s248 = scalar_select %p247, %s22, 3
          %s249 = smul.addr %s248, 4
          %s250 = scalar_lea.vmem %s3, %s249
        $region32: #{multi_head_attention.3} parent=15 // pred_fallthru
          _
      $region16: #{multi_head_attention.3} parent=5 // pred_fallthru
        _
      %p251 = scmp.le.s32.totalorder 1, %s13
      %p252 = scmp.lt.s32.totalorder %s13, 9
      %p253 = pnand %p251, %p252
      %p254 = pneg %p253
      // Predicated region
      $region33: #{multi_head_attention.3} parent=5 // pred_check
        _
      $region34: #{multi_head_attention.3} parent=5 // pred_check_branch
        %256 = sbr.rel (%p253) target = $region36
      $region35: #{multi_head_attention.3} parent=5 // pred_region
        %s257 = ssub.s32 %s13, 1
        %p258 = scmp.lt.s32.totalorder %s24, 1
        %s259 = scalar_select %p258, %s24, 1
        %p260 = scmp.lt.s32.totalorder %s26, 3
        %s261 = scalar_select %p260, %s26, 3
        %p262 = scmp.lt.s32.totalorder %s25, 0
        %s263 = scalar_select %p262, %s25, 0
        %s264 = sadd.s32 %s263, %s261
        %s265 = smul.addr %s259, 4
        %s266 = sadd.s32 %s264, %s265
        %s267 = smul.addr %s266, 4
        %s268 = scalar_lea.vmem %s0, %s267
        %p269 = pneg %p69
        %p270 = pneg %p66
        %p271 = scmp.lt.s32.totalorder %s24, 1
        %s272 = scalar_select %p271, %s24, 1
        %p273 = scmp.lt.s32.totalorder %s26, 3
        %s274 = scalar_select %p273, %s26, 3
        %p275 = scmp.lt.s32.totalorder %s27, 0
        %s276 = scalar_select %p275, %s27, 0
        %s277 = sadd.s32 %s276, %s274
        %s278 = smul.addr %s272, 4
        %s279 = sadd.s32 %s277, %s278
        %s280 = smul.addr %s279, 4
        %s281 = scalar_lea.vmem %s1, %s280
        %p282 = pneg %p99
        %p283 = pneg %p96
        %p284 = scmp.lt.s32.totalorder %s24, 1
        %s285 = scalar_select %p284, %s24, 1
        %p286 = scmp.lt.s32.totalorder %s26, 3
        %s287 = scalar_select %p286, %s26, 3
        %p288 = scmp.lt.s32.totalorder %s27, 0
        %s289 = scalar_select %p288, %s27, 0
        %s290 = sadd.s32 %s289, %s287
        %s291 = smul.addr %s285, 4
        %s292 = sadd.s32 %s290, %s291
        %s293 = smul.addr %s292, 4
        %s294 = scalar_lea.vmem %s2, %s293
        %p295 = pneg %p129
        %p296 = pneg %p126
        %p297 = scmp.lt.s32.totalorder %s26, 3
        %s298 = scalar_select %p297, %s26, 3
        %s299 = smul.addr %s298, 4
        %s300 = scalar_lea.vmem %s3, %s299
        %p301 = pneg %p155
        %p302 = pneg %p152
        %p303 = pneg %p183
        %p304 = pneg %p180
        %s305 = sand.u32 %s170, 1
        %s306 = scalar_lea.sflag [#allocation7], %s305
        %s307 = sand.u32 %s170, 1
        %s308 = smul.addr %s307, 8
        %s309 = scalar_lea.vmem [#allocation6], %s308
        %p310 = scmp.lt.s32.totalorder %s24, 1
        %s311 = scalar_select %p310, %s24, 1
        %p312 = scmp.lt.s32.totalorder %s26, 3
        %s313 = scalar_select %p312, %s26, 3
        %p314 = scmp.lt.s32.totalorder %s25, 0
        %s315 = scalar_select %p314, %s25, 0
        %s316 = sadd.s32 %s315, %s313
        %s317 = smul.addr %s311, 4
        %s318 = sadd.s32 %s316, %s317
        %s319 = smul.addr %s318, 4
        %s320 = scalar_lea.vmem %s0, %s319
        %p321 = scmp.lt.s32.totalorder %s24, 1
        %s322 = scalar_select %p321, %s24, 1
        %p323 = scmp.lt.s32.totalorder %s26, 3
        %s324 = scalar_select %p323, %s26, 3
        %p325 = scmp.lt.s32.totalorder %s27, 0
        %s326 = scalar_select %p325, %s27, 0
        %s327 = sadd.s32 %s326, %s324
        %s328 = smul.addr %s322, 4
        %s329 = sadd.s32 %s327, %s328
        %s330 = smul.addr %s329, 4
        %s331 = scalar_lea.vmem %s1, %s330
        %p332 = scmp.lt.s32.totalorder %s24, 1
        %s333 = scalar_select %p332, %s24, 1
        %p334 = scmp.lt.s32.totalorder %s26, 3
        %s335 = scalar_select %p334, %s26, 3
        %p336 = scmp.lt.s32.totalorder %s27, 0
        %s337 = scalar_select %p336, %s27, 0
        %s338 = sadd.s32 %s337, %s335
        %s339 = smul.addr %s333, 4
        %s340 = sadd.s32 %s338, %s339
        %s341 = smul.addr %s340, 4
        %s342 = scalar_lea.vmem %s2, %s341
        %p343 = scmp.lt.s32.totalorder %s26, 3
        %s344 = scalar_select %p343, %s26, 3
        %s345 = smul.addr %s344, 4
        %s346 = scalar_lea.vmem %s3, %s345
        %p348 = scmp.eq.s32.totalorder %s27, 0
        // Predicated region
        $region37: #{multi_head_attention.3} parent=35 // pred_check
          %p349 = pneg %p348
        $region38: #{multi_head_attention.3} parent=35 // pred_check_branch
          %351 = sbr.rel (%p349) target = $region40
        $region39: #{multi_head_attention.3} parent=35 // pred_region
          %vm352 = vcmask 7168
          %353 = vst.msk [vmem:[#allocation2] sm:$0xff] %vm352, -inf
          %354 = vst.msk [vmem:[#allocation3] sm:$0xff] %vm352, 0.0
          %vm355 = vcmask 64512
          %356 = vst.msk [vmem:[#allocation4] sm:$0xff] %vm355, 0.0
        $region40: #{multi_head_attention.3} parent=35 // pred_fallthru
          _
        %p357 = scmp.eq.s32.totalorder %s26, 0
        %p358 = pnand %p348, %p357
        %p359 = pneg %p358
        // Predicated region
        $region41: #{multi_head_attention.3} parent=35 // pred_check
          _
        $region42: #{multi_head_attention.3} parent=35 // pred_check_branch
          %361 = sbr.rel (%p358) target = $region44
        $region43: #{multi_head_attention.3} parent=35 // pred_region
          %vm362 = vcmask 261120
          %363 = vst.msk [vmem:[#allocation5] sm:$0xff] %vm362, 0.0
        $region44: #{multi_head_attention.3} parent=35 // pred_fallthru
          _
        %v364 = vld [vmem:[%s320] sm:$0xf]
        %v365 = vld [vmem:[%s331] sm:$0xf]
        %v366 = vld [vmem:[%s342] sm:$0xf]
        %vm367 = vcmask 64512
        %v369 = vsel %vm367, %v364, 0
        %v372 = vsel %vm367, %v365, 0
        %374 = vmatprep.subr.bf16.mxu0 0
        %375 = vmatpush1.bf16.xpose.msra.mxu0 0
        %376 = vmatprep.subr.bf16.mxu0 0
        %377 = vmatpush1.bf16.xpose.msra.mxu0 0
        %378 = vmatprep.subr.bf16.mxu0 0
        %379 = vmatpush1.bf16.xpose.msra.mxu0 0
        %380 = vmatprep.subr.bf16.mxu0 0
        %381 = vmatpush1.bf16.xpose.msra.mxu0 0
        %382 = vmatprep.subr.bf16.mxu0 0
        %383 = vmatpush1.bf16.xpose.msra.mxu0 0
        %384 = vmatprep.subr.bf16.mxu0 0
        %385 = vmatpush1.bf16.xpose.msra.mxu0 0
        %386 = vmatprep.subr.bf16.mxu0 0
        %387 = vmatpush1.bf16.xpose.msra.mxu0 0
        %388 = vmatprep.subr.bf16.mxu0 0
        %389 = vmatpush1.bf16.xpose.msra.mxu0 %v372
        %390 = vmatprep.subr.bf16.mxu0 0
        %391 = vmatpush2.bf16.xpose.msra.mxu0 0
        %392 = vmatprep.subr.bf16.mxu0 0
        %393 = vmatpush2.bf16.xpose.msra.mxu0 0
        %394 = vmatprep.subr.bf16.mxu0 0
        %395 = vmatpush2.bf16.xpose.msra.mxu0 0
        %396 = vmatprep.subr.bf16.mxu0 0
        %397 = vmatpush2.bf16.xpose.msra.mxu0 0
        %398 = vmatprep.subr.bf16.mxu0 0
        %399 = vmatpush2.bf16.xpose.msra.mxu0 0
        %400 = vmatprep.subr.bf16.mxu0 0
        %401 = vmatpush2.bf16.xpose.msra.mxu0 0
        %402 = vmatprep.subr.bf16.mxu0 0
        %403 = vmatpush2.bf16.xpose.msra.mxu0 0
        %404 = vmatprep.subr.bf16.mxu0 0
        %405 = vmatpush2.bf16.xpose.msra.mxu0 0
        %406 = vmatprep.mubr.bf16.mxu0 0
        %407 = vmatmul.mubr.bf16.gmra.mxu0 %v369
        %v408 = vpop.f32.mrf.mxu0
        %v409 = vadd.f32 0.0, %v408
        %v410 = vpop.f32.mrf.mxu0
        %v411 = vpop.f32.mrf.mxu0
        %v412 = vpop.f32.mrf.mxu0
        %413 = vdwg.mxu0
        %v414 = vld [vmem:[#allocation2] sm:$0xff]
        %v415 = vsel %vm367, %v409, -inf
        %416 = vmax.xlane.f32.xlu0 %v415
        %v417 = vpop.xlane.xlu0 %416
        %v418 = vmax.f32 %v414, %v417
        %v419 = vsub.f32 %v414, %v418
        %v420 = vmul.f32 %v419, 1.442695
        %v421 = vpow.pop %v420
        %423 = vset.pattern.permute.xlu0 0
        %424 = vperm.xlu0 %423, %v418
        %v425 = vpop.permute.xlu0 %424
        %v427 = vsub.f32 %v409, %v425
        %v428 = vmul.f32 %v427, 1.442695
        %v429 = vpow.pop %v428
        %v430 = vld [vmem:[#allocation3] sm:$0xff]
        %v431 = vmul.f32 %v421, %v430
        %v432 = vsel %vm367, %v429, 0.0
        %433 = vadd.xlane.f32.xlu0 %v432
        %v434 = vpop.xlane.xlu0 %433
        %v435 = vadd.f32 %v431, %v434
        %vm436 = vcmask 7168
        %437 = vst.msk [vmem:[#allocation3] sm:$0xff] %vm436, %v435
        %v438 = vld [vmem:[#allocation4] sm:$0xff]
        %440 = vset.pattern.permute.xlu0 0
        %441 = vperm.xlu0 %440, %v421
        %v442 = vpop.permute.xlu0 %441
        %v444 = vmul.f32 %v442, %v438
        %v445 = vpack.c.bf16 %v429, %v429
        %v447 = vsel %vm367, %v445, 0
        %vm449 = vcmask 1043456
        %v451 = vsel %vm449, %v366, 0
        %453 = vmatprep.subr.bf16.mxu0 0
        %454 = vmatpush1.bf16.msra.mxu0 0
        %455 = vmatprep.subr.bf16.mxu0 0
        %456 = vmatpush1.bf16.msra.mxu0 0
        %457 = vmatprep.subr.bf16.mxu0 0
        %458 = vmatpush1.bf16.msra.mxu0 0
        %459 = vmatprep.subr.bf16.mxu0 0
        %460 = vmatpush1.bf16.msra.mxu0 0
        %461 = vmatprep.subr.bf16.mxu0 0
        %462 = vmatpush1.bf16.msra.mxu0 0
        %463 = vmatprep.subr.bf16.mxu0 0
        %464 = vmatpush1.bf16.msra.mxu0 0
        %465 = vmatprep.subr.bf16.mxu0 0
        %466 = vmatpush1.bf16.msra.mxu0 0
        %467 = vmatprep.subr.bf16.mxu0 0
        %468 = vmatpush1.bf16.msra.mxu0 %v451
        %469 = vmatprep.subr.bf16.mxu0 0
        %470 = vmatpush2.bf16.msra.mxu0 0
        %471 = vmatprep.subr.bf16.mxu0 0
        %472 = vmatpush2.bf16.msra.mxu0 0
        %473 = vmatprep.subr.bf16.mxu0 0
        %474 = vmatpush2.bf16.msra.mxu0 0
        %475 = vmatprep.subr.bf16.mxu0 0
        %476 = vmatpush2.bf16.msra.mxu0 0
        %477 = vmatprep.subr.bf16.mxu0 0
        %478 = vmatpush2.bf16.msra.mxu0 0
        %479 = vmatprep.subr.bf16.mxu0 0
        %480 = vmatpush2.bf16.msra.mxu0 0
        %481 = vmatprep.subr.bf16.mxu0 0
        %482 = vmatpush2.bf16.msra.mxu0 0
        %483 = vmatprep.subr.bf16.mxu0 0
        %484 = vmatpush2.bf16.msra.mxu0 0
        %485 = vmatprep.mubr.bf16.mxu0 0
        %486 = vmatmul.mubr.bf16.gmra.mxu0 %v447
        %v487 = vpop.f32.mrf.mxu0
        %v488 = vadd.f32 0.0, %v487
        %v489 = vpop.f32.mrf.mxu0
        %v490 = vpop.f32.mrf.mxu0
        %v491 = vpop.f32.mrf.mxu0
        %492 = vdwg.mxu0
        %v493 = vadd.f32 %v444, %v488
        %494 = vst.msk [vmem:[#allocation4] sm:$0xff] %vm367, %v493
        %495 = vst.msk [vmem:[#allocation2] sm:$0xff] %vm436, %v418
        // Predicated region
        $region45: #{multi_head_attention.3} parent=35 // pred_check
          %p496 = pneg %p348
        $region46: #{multi_head_attention.3} parent=35 // pred_check_branch
          %498 = sbr.rel (%p496) target = $region48
        $region47: #{multi_head_attention.3} parent=35 // pred_region
          %v499 = vld [vmem:[#allocation3] sm:$0xff]
          %v500 = vrcp.pop %v499
          %v501 = vmul.f32 %v500, 2.0
          %v502 = vld [vmem:[#allocation4] sm:$0xff]
          %504 = vset.pattern.permute.xlu0 0
          %505 = vperm.xlu0 %504, %v501
          %v506 = vpop.permute.xlu0 %505
          %v508 = vmul.f32 %v502, %v506
          %v509 = vpack.c.bf16 %v508, %v508
          %v510 = vld [vmem:[#allocation5] sm:$0xff]
          %v511 = vld [vmem:[%s346] sm:$0xf]
          %v513 = vsel %vm367, %v509, 0
          %v516 = vsel %vm449, %v511, 0
          %518 = vmatprep.subr.bf16.mxu0 0
          %519 = vmatpush1.bf16.msra.mxu0 0
          %520 = vmatprep.subr.bf16.mxu0 0
          %521 = vmatpush1.bf16.msra.mxu0 0
          %522 = vmatprep.subr.bf16.mxu0 0
          %523 = vmatpush1.bf16.msra.mxu0 0
          %524 = vmatprep.subr.bf16.mxu0 0
          %525 = vmatpush1.bf16.msra.mxu0 0
          %526 = vmatprep.subr.bf16.mxu0 0
          %527 = vmatpush1.bf16.msra.mxu0 0
          %528 = vmatprep.subr.bf16.mxu0 0
          %529 = vmatpush1.bf16.msra.mxu0 0
          %530 = vmatprep.subr.bf16.mxu0 0
          %531 = vmatpush1.bf16.msra.mxu0 0
          %532 = vmatprep.subr.bf16.mxu0 0
          %533 = vmatpush1.bf16.msra.mxu0 %v516
          %534 = vmatprep.subr.bf16.mxu0 0
          %535 = vmatpush2.bf16.msra.mxu0 0
          %536 = vmatprep.subr.bf16.mxu0 0
          %537 = vmatpush2.bf16.msra.mxu0 0
          %538 = vmatprep.subr.bf16.mxu0 0
          %539 = vmatpush2.bf16.msra.mxu0 0
          %540 = vmatprep.subr.bf16.mxu0 0
          %541 = vmatpush2.bf16.msra.mxu0 0
          %542 = vmatprep.subr.bf16.mxu0 0
          %543 = vmatpush2.bf16.msra.mxu0 0
          %544 = vmatprep.subr.bf16.mxu0 0
          %545 = vmatpush2.bf16.msra.mxu0 0
          %546 = vmatprep.subr.bf16.mxu0 0
          %547 = vmatpush2.bf16.msra.mxu0 0
          %548 = vmatprep.subr.bf16.mxu0 0
          %549 = vmatpush2.bf16.msra.mxu0 0
          %550 = vmatprep.mubr.bf16.mxu0 0
          %551 = vmatmul.mubr.bf16.gmra.mxu0 %v513
          %v552 = vpop.f32.mrf.mxu0
          %v553 = vadd.f32 0.0, %v552
          %v554 = vpop.f32.mrf.mxu0
          %v555 = vpop.f32.mrf.mxu0
          %v556 = vpop.f32.mrf.mxu0
          %557 = vdwg.mxu0
          %v558 = vadd.f32 %v510, %v553
          %vm559 = vcmask 261120
          %560 = vst.msk [vmem:[#allocation5] sm:$0xff] %vm559, %v558
        $region48: #{multi_head_attention.3} parent=35 // pred_fallthru
          _
        %p561 = scmp.eq.s32.totalorder %s26, 3
        %p562 = pnand %p348, %p561
        %p563 = pneg %p562
        // Predicated region
        $region49: #{multi_head_attention.3} parent=35 // pred_check
          _
        $region50: #{multi_head_attention.3} parent=35 // pred_check_branch
          %565 = sbr.rel (%p562) target = $region52
        $region51: #{multi_head_attention.3} parent=35 // pred_region
          %v566 = vld [vmem:[#allocation5] sm:$0xff]
          %vm567 = vcmask 261120
          %568 = vst.msk [vmem:[%s309] sm:$0xff] %vm567, %v566
        $region52: #{multi_head_attention.3} parent=35 // pred_fallthru
          _
        %s569 = sand.u32 %s170, 1
        %s570 = scalar_lea.sflag [#allocation7], %s569
        %s571 = sand.u32 %s170, 1
        %s572 = smul.addr %s571, 8
        %s573 = scalar_lea.vmem [#allocation6], %s572
        // Predicated region
        $region53: #{multi_head_attention.3} parent=35 // pred_check
          %p574 = pneg %p180
        $region54: #{multi_head_attention.3} parent=35 // pred_check_branch
          %576 = sbr.rel (%p574) target = $region56
        $region55: #{multi_head_attention.3} parent=35 // pred_region
          %s578 = ssub.s32 128, 128
          %579 = vsyncadd %s570, %s578
          %s580 = sadd.s32 %s25, %s24
          %s581 = smul.addr %s580, 128
          %s582 = scalar_lea.hbm %s4, %s581
          %s584 = sshll.u32 %s573, 4
          %s585 = int_to_ptr.vmem [resolvable:$true] %s584
          %587 = dma.vmem_to_hbm [thread:$0]  %s585, 128, %s582, %s570
        $region56: #{multi_head_attention.3} parent=35 // pred_fallthru
          _
      $region36: #{multi_head_attention.3} parent=5 // pred_fallthru
        _
      %p588 = scmp.le.s32.totalorder 2, %s13
      // Predicated region
      $region57: #{multi_head_attention.3} parent=5 // pred_check
        %p589 = pneg %p588
      $region58: #{multi_head_attention.3} parent=5 // pred_check_branch
        %591 = sbr.rel (%p589) target = $region60
      $region59: #{multi_head_attention.3} parent=5 // pred_region
        %s592 = ssub.s32 %s13, 2
        // Predicated region
        $region61: #{multi_head_attention.3} parent=59 // pred_check
          %p593 = pneg %p186
        $region62: #{multi_head_attention.3} parent=59 // pred_check_branch
          %595 = sbr.rel (%p593) target = $region64
        $region63: #{multi_head_attention.3} parent=59 // pred_region
          %s596 = sand.u32 %s171, 1
          %s597 = scalar_lea.sflag [#allocation7], %s596
          %s598 = sand.u32 %s171, 1
          %s599 = smul.addr %s598, 8
          %s600 = scalar_lea.vmem [#allocation6], %s599
          %601 = dma.done %s597, 128
        $region64: #{multi_head_attention.3} parent=59 // pred_fallthru
          _
      $region60: #{multi_head_attention.3} parent=5 // pred_fallthru
        _
    $region6: #{multi_head_attention.3} parent=1 // loop_footer
      %s17 = sadd.s32 1, %s13
    $region7: #{multi_head_attention.3} parent=1 // loop_footer_branch
      %12 = sbr.rel target = $region3
    $region8: #{multi_head_attention.3} parent=1 // loop_exit
      _
    %602 = vsyncpa [#allocation7], 1
    %s603 = scalar_lea.sflag [#allocation7], 1
    %604 = vsyncpa %s603, 1

</llo_original>
